<compile_context>
chip_gen: v7x
topology: tpu7x:2x2x1
jax: 0.10.0
libtpu: 0.0.40
codegen_flags: <defaults>
</compile_context>

<pallas_src>
import jax
import jax.numpy as jnp
from jax.experimental import pallas as pl
from jax.experimental.pallas import tpu as pltpu


def _round_up(x, m):
    return ((x + m - 1) // m) * m


# ----------------------------------------------------------------------------
# Pallas kernel: shared MLP (L x [1x1 conv -> folded-BN -> ReLU]) + max over K
# ----------------------------------------------------------------------------
def _sa_mlp_kernel(x_ref, *refs):
    """One (batch, M-tile, K-chunk) grid step.

    x_ref: (k_chunk, tile_m, d_in) bf16 grouped slab, neighbor-major.
    refs : alternating (weight, bias) refs for every layer, then
           o_ref (C_out, tile_m) f32 output block and
           acc_ref (tile_m, C_out) f32 scratch (running max across K-chunks).
    """
    o_ref, acc_ref = refs[-2], refs[-1]
    wb = refs[:-2]
    kc = pl.program_id(2)
    k_chunk, tile_m, d_in = x_ref.shape
    c_out = acc_ref.shape[-1]

    # One row slab covering the whole K-chunk: every 1x1 conv is a single MXU
    # matmul.  The (k_chunk, tile_m) merge is layout-free (tile_m % 8 == 0).
    h = x_ref[...].reshape(k_chunk * tile_m, d_in)

    # Hidden layers: matmul -> bias -> ReLU, activations kept in bf16 (#2).
    for i in range(0, len(wb) - 2, 2):
        w_ref, b_ref = wb[i], wb[i + 1]
        h = jnp.dot(h, w_ref[...], preferred_element_type=jnp.float32)
        h = jnp.maximum(h + b_ref[...], 0.0).astype(jnp.bfloat16)

    # Last layer: matmul only; its bias/ReLU commute with the max-pool and are
    # applied once per M-tile at the very end.
    w_ref, b_ref = wb[-2], wb[-1]
    h = jnp.dot(h, w_ref[...], preferred_element_type=jnp.float32)

    # Neighbor max inside this chunk: k_chunk-1 plain VPU maxima (#5).
    h3 = h.reshape(k_chunk, tile_m, c_out)
    pooled = h3[0]
    for j in range(1, k_chunk):
        pooled = jnp.maximum(pooled, h3[j])

    # Running max across K-chunks, held in VMEM scratch.
    @pl.when(kc == 0)
    def _():
        acc_ref[...] = jnp.full_like(acc_ref, -jnp.inf)

    acc_ref[...] = jnp.maximum(acc_ref[...], pooled)

    # Finalize: bias + ReLU on tile_m rows, one transpose so the store is
    # lane-dense ((C_out, tile_m): lane dim is a multiple of 128) and the
    # result already has the module's (B, C_out, M) layout.
    @pl.when(kc == pl.num_programs(2) - 1)
    def _():
        out = jnp.maximum(acc_ref[...] + b_ref[...], 0.0)
        o_ref[...] = jnp.transpose(out).astype(o_ref.dtype)


def sa_shared_mlp(grouped, layer_params, *, tile_m, k_chunk, bn_eps=1e-5):
    """grouped: (B, K_pad, M_pad, D_in) bf16 -> (B, C_out, M_pad) float32."""
    b, k_pad, m_pad, d_in = grouped.shape
    assert m_pad % tile_m == 0 and k_pad % k_chunk == 0
    c_out = layer_params[-1][0].shape[1]

    operands = [grouped]
    in_specs = [pl.BlockSpec((None, k_chunk, tile_m, d_in),
                             lambda bb, i, kc: (bb, kc, i, 0))]
    for w, gamma, beta, mean, var in layer_params:
        d_i, d_o = w.shape
        # Fold eval-mode BN (general running stats) into the 1x1-conv weights.
        scale = gamma / jnp.sqrt(var + bn_eps)                      # (d_o,)
        w_folded = (w * scale[None, :]).astype(jnp.bfloat16)
        bias = (beta - scale * mean).reshape(1, d_o).astype(jnp.float32)
        operands += [w_folded, bias]
        in_specs += [pl.BlockSpec((d_i, d_o), lambda bb, i, kc: (0, 0)),
                     pl.BlockSpec((1, d_o), lambda bb, i, kc: (0, 0))]

    return pl.pallas_call(
        _sa_mlp_kernel,
        out_shape=jax.ShapeDtypeStruct((b, c_out, m_pad), jnp.float32),
        grid=(b, m_pad // tile_m, k_pad // k_chunk),
        in_specs=in_specs,
        out_specs=pl.BlockSpec((None, c_out, tile_m),
                               lambda bb, i, kc: (bb, 0, i)),
        scratch_shapes=[pltpu.VMEM((tile_m, c_out), jnp.float32)],
        compiler_params=pltpu.CompilerParams(
            dimension_semantics=("parallel", "parallel", "arbitrary"),
            vmem_limit_bytes=32 * 1024 * 1024),
    )(*operands)


# ----------------------------------------------------------------------------
# Glue: furthest point sampling + ball query (plain JAX, run under one jit)
# ----------------------------------------------------------------------------
def furthest_point_sample(points_bn3, num_centroids):
    """points_bn3: (B, N, 3) -> (B, M) int32 indices (CUDA FPS: start idx 0)."""
    # TODO(synk): port FPS to a small Pallas kernel; it is an inherently
    # sequential argmax chain and currently stays as a lax.fori_loop.
    def single(pts):
        n = pts.shape[0]

        def body(i, state):
            dists, idxs, farthest = state
            idxs = idxs.at[i].set(farthest)
            centroid = pts[farthest]
            d = jnp.sum((pts - centroid[None, :]) ** 2, axis=-1)
            dists = jnp.minimum(dists, d)
            farthest = jnp.argmax(dists).astype(jnp.int32)
            return dists, idxs, farthest

        dists0 = jnp.full((n,), 1e10, dtype=jnp.float32)
        idxs0 = jnp.zeros((num_centroids,), dtype=jnp.int32)
        _, idxs, _ = jax.lax.fori_loop(0, num_centroids, body,
                                       (dists0, idxs0, jnp.int32(0)))
        return idxs

    return jax.vmap(single)(points_bn3)


def ball_query(q_points_bm3, s_points_bn3, num_samples, radius):
    """q: (B, M, 3), s: (B, N, 3) -> (B, M, K) int32 (pad with first hit)."""
    n = s_points_bn3.shape[1]
    d2 = jnp.sum(
        (q_points_bm3[:, :, None, :] - s_points_bn3[:, None, :, :]) ** 2, axis=-1)
    within = d2 < radius * radius
    cand = jnp.where(within, jnp.arange(n, dtype=jnp.int32)[None, None, :], n)
    # K smallest indices within radius = first K hits in index order (#11).
    first_k = -jax.lax.top_k(-cand, num_samples)[0]          # ascending
    first = first_k[:, :, :1]
    out = jnp.where(first_k >= n, first, first_k)            # pad with first hit
    out = jnp.where(out >= n, 0, out)                        # degenerate fallback
    return out.astype(jnp.int32)


def set_abstraction_forward(s_points, s_feats, layer_params, *, num_centroids,
                            num_samples, radius, tile_m=256, k_chunk=8,
                            bn_eps=1e-5):
    """s_points: (B, 3, N), s_feats: (B, C_in, N).
    Returns (q_points (B, 3, M), q_feats (B, C_out, M))."""
    b = s_points.shape[0]
    pts = jnp.transpose(s_points, (0, 2, 1))           # (B, N, 3)
    feats = jnp.transpose(s_feats, (0, 2, 1))          # (B, N, C_in)

    fps_idx = furthest_point_sample(pts, num_centroids)          # (B, M)
    q_pts = jax.vmap(lambda p, i: p[i])(pts, fps_idx)            # (B, M, 3)
    nbr_idx = ball_query(q_pts, pts, num_samples, radius)        # (B, M, K)

    # --- padding so kernel tiles are lane/sublane aligned -------------------
    m = num_centroids
    tile_m = min(tile_m, _round_up(m, 128))     # output lane dim % 128 == 0
    m_pad = _round_up(m, tile_m)
    k_chunk = min(k_chunk, num_samples)
    k_pad = _round_up(num_samples, k_chunk)

    if m_pad != m:
        nbr_idx = jnp.pad(nbr_idx, ((0, 0), (0, m_pad - m), (0, 0)))
        q_pts_p = jnp.pad(q_pts, ((0, 0), (0, m_pad - m), (0, 0)))
    else:
        q_pts_p = q_pts
    if k_pad != num_samples:
        # Duplicate neighbors are harmless under the max-pool.
        pad = jnp.broadcast_to(nbr_idx[:, :, :1], (b, m_pad, k_pad - num_samples))
        nbr_idx = jnp.concatenate([nbr_idx, pad], axis=-1)

    # --- bf16 gather, neighbor-major layout (#6) -----------------------------
    s_all = jnp.concatenate([pts, feats], axis=-1).astype(jnp.bfloat16)  # (B,N,D)
    idx_bkm = jnp.transpose(nbr_idx, (0, 2, 1))                          # (B,Kp,Mp)
    grouped = jax.vmap(lambda f, i: f[i])(s_all, idx_bkm)                # (B,Kp,Mp,D)
    grouped = grouped.at[..., :3].add(
        -q_pts_p.astype(jnp.bfloat16)[:, None, :, :])                    # rel coords

    q_feats = sa_shared_mlp(grouped, layer_params, tile_m=tile_m,
                            k_chunk=k_chunk, bn_eps=bn_eps)[:, :, :m]
    q_points = jnp.transpose(q_pts, (0, 2, 1))                           # (B, 3, M)
    return q_points, q_feats


# ----------------------------------------------------------------------------
# Synthetic parameters + pure-JAX f32 reference
# ----------------------------------------------------------------------------
def init_params(key, input_dim, output_dims):
    """Per layer: (conv weight (d_in,d_out), gamma, beta, running_mean, running_var)."""
    d = input_dim + 3
    params = []
    for out_dim in output_dims:
        key, k_w, k_g, k_b, k_m, k_v = jax.random.split(key, 6)
        w = jax.random.normal(k_w, (d, out_dim), jnp.float32) * 0.1
        gamma = 1.0 + 0.1 * jax.random.normal(k_g, (out_dim,), jnp.float32)
        beta = 0.1 * jax.random.normal(k_b, (out_dim,), jnp.float32)
        mean = 0.05 * jax.random.normal(k_m, (out_dim,), jnp.float32)
        var = jax.random.uniform(k_v, (out_dim,), jnp.float32, 0.5, 1.5)
        params.append((w, gamma, beta, mean, var))
        d = out_dim
    return params


def reference_forward(s_points, s_feats, layer_params, *, num_centroids,
                      num_samples, radius, bn_eps=1e-5):
    """Pure-JAX f32 reference with unfolded eval-mode BatchNorm."""
    pts = jnp.transpose(s_points, (0, 2, 1))
    feats = jnp.transpose(s_feats, (0, 2, 1))
    fps_idx = furthest_point_sample(pts, num_centroids)
    q_pts = jax.vmap(lambda p, i: p[i])(pts, fps_idx)
    nbr_idx = ball_query(q_pts, pts, num_samples, radius)
    s_all = jnp.concatenate([pts, feats], axis=-1)
    grouped = jax.vmap(lambda f, i: f[i])(s_all, nbr_idx)        # (B,M,K,D)
    grouped = grouped.at[..., :3].add(-q_pts[:, :, None, :])
    h = grouped
    for w, gamma, beta, mean, var in layer_params:
        h = h @ w
        h = (h - mean) * (gamma / jnp.sqrt(var + bn_eps)) + beta
        h = jnp.maximum(h, 0.0)
    q_feats = jnp.max(h, axis=2)                                 # (B, M, C_out)
    return jnp.transpose(q_pts, (0, 2, 1)), jnp.transpose(q_feats, (0, 2, 1))


if __name__ == "__main__":
    key = jax.random.PRNGKey(0)
    B, C_in, N = 2, 4, 64
    num_centroids, num_samples, radius = 16, 8, 0.4
    output_dims = (16, 32)

    k_pts, k_feats, k_params = jax.random.split(key, 3)
    s_points = jax.random.uniform(k_pts, (B, 3, N), jnp.float32)
    s_feats = jax.random.normal(k_feats, (B, C_in, N), jnp.float32)
    params = init_params(k_params, C_in, output_dims)

    fwd = jax.jit(lambda sp, sf: set_abstraction_forward(
        sp, sf, params, num_centroids=num_centroids,
        num_samples=num_samples, radius=radius))
    q_points, q_feats = fwd(s_points, s_feats)
    jax.block_until_ready((q_points, q_feats))

    assert q_points.shape == (B, 3, num_centroids)
    assert q_feats.shape == (B, output_dims[-1], num_centroids)
    assert bool(jnp.all(jnp.isfinite(q_feats)))

    # Correctness vs pure-JAX f32 reference (bf16 matmul path -> loose tol).
    ref_pts, ref_feats = reference_forward(
        s_points, s_feats, params, num_centroids=num_centroids,
        num_samples=num_samples, radius=radius)
    assert bool(jnp.allclose(q_points, ref_pts))
    assert bool(jnp.allclose(q_feats, ref_feats, rtol=5e-2, atol=5e-2))

    print("KERNEL_OK")
</pallas_src>

<mosaic_0001>
module attributes {stable_mosaic.version = 11 : i64} {
  func.func @_sa_mlp_kernel(%arg0: i32, %arg1: i32, %arg2: i32, %arg3: memref<1x8x128x7xbf16, #tpu.memory_space<vmem>>, %arg4: memref<7x16xbf16, #tpu.memory_space<vmem>>, %arg5: memref<1x16xf32, #tpu.memory_space<vmem>>, %arg6: memref<16x32xbf16, #tpu.memory_space<vmem>>, %arg7: memref<1x32xf32, #tpu.memory_space<vmem>>, %arg8: memref<1x32x128xf32, #tpu.memory_space<vmem>>, %arg9: memref<128x32xf32, #tpu.memory_space<vmem>>) attributes {dimension_semantics = [#tpu.dimension_semantics<parallel>, #tpu.dimension_semantics<parallel>, #tpu.dimension_semantics<arbitrary>], iteration_bounds = array<i64: 2, 1, 1>, scalar_prefetch = 0 : i64, scratch_operands = 1 : i64, tpu.core_type = #tpu.core_type<tc>, window_params = [{transform_indices = @transform_0, window_bounds = array<i64: 1, 8, 128, 7>}, {pipeline_mode = #tpu.pipeline_mode<synchronous>, transform_indices = @transform_1, window_bounds = array<i64: 7, 16>}, {pipeline_mode = #tpu.pipeline_mode<synchronous>, transform_indices = @transform_2, window_bounds = array<i64: 1, 16>}, {pipeline_mode = #tpu.pipeline_mode<synchronous>, transform_indices = @transform_3, window_bounds = array<i64: 16, 32>}, {pipeline_mode = #tpu.pipeline_mode<synchronous>, transform_indices = @transform_4, window_bounds = array<i64: 1, 32>}, {transform_indices = @transform_5, window_bounds = array<i64: 1, 32, 128>}]} {
    %c0 = arith.constant 0 : index
    %c0_0 = arith.constant 0 : index
    %c0_1 = arith.constant 0 : index
    %c0_2 = arith.constant 0 : index
    %0 = vector.load %arg3[%c0, %c0_0, %c0_1, %c0_2] : memref<1x8x128x7xbf16, #tpu.memory_space<vmem>>, vector<1x8x128x7xbf16>
    %1 = vector.shape_cast %0 : vector<1x8x128x7xbf16> to vector<8x128x7xbf16>
    %2 = vector.shape_cast %1 : vector<8x128x7xbf16> to vector<1024x7xbf16>
    %c0_3 = arith.constant 0 : index
    %c0_4 = arith.constant 0 : index
    %3 = vector.load %arg4[%c0_3, %c0_4] : memref<7x16xbf16, #tpu.memory_space<vmem>>, vector<7x16xbf16>
    %cst = arith.constant dense<0.000000e+00> : vector<1024x16xf32>
    %4 = tpu.matmul %2, %3, %cst {dimension_numbers = #tpu.dot_dimension_numbers<[1], [0], [0], [1], [0, 0, 1, 1], [], []>} : vector<1024x7xbf16>, vector<7x16xbf16>, vector<1024x16xf32> -> vector<1024x16xf32>
    %c0_5 = arith.constant 0 : index
    %c0_6 = arith.constant 0 : index
    %5 = vector.load %arg5[%c0_5, %c0_6] : memref<1x16xf32, #tpu.memory_space<vmem>>, vector<1x16xf32>
    %6 = vector.broadcast %5 : vector<1x16xf32> to vector<1024x16xf32>
    %7 = arith.addf %4, %6 : vector<1024x16xf32>
    %cst_7 = arith.constant 0.000000e+00 : f32
    %8 = vector.broadcast %cst_7 : f32 to vector<1024x16xf32>
    %9 = arith.maximumf %7, %8 : vector<1024x16xf32>
    %10 = arith.truncf %9 : vector<1024x16xf32> to vector<1024x16xbf16>
    %c0_8 = arith.constant 0 : index
    %c0_9 = arith.constant 0 : index
    %11 = vector.load %arg6[%c0_8, %c0_9] : memref<16x32xbf16, #tpu.memory_space<vmem>>, vector<16x32xbf16>
    %cst_10 = arith.constant dense<0.000000e+00> : vector<1024x32xf32>
    %12 = tpu.matmul %10, %11, %cst_10 {dimension_numbers = #tpu.dot_dimension_numbers<[1], [0], [0], [1], [0, 0, 1, 1], [], []>} : vector<1024x16xbf16>, vector<16x32xbf16>, vector<1024x32xf32> -> vector<1024x32xf32>
    %13 = vector.shape_cast %12 : vector<1024x32xf32> to vector<8x128x32xf32>
    %14 = vector.extract_strided_slice %13 {offsets = [0, 0, 0], sizes = [1, 128, 32], strides = [1, 1, 1]} : vector<8x128x32xf32> to vector<1x128x32xf32>
    %15 = vector.shape_cast %14 : vector<1x128x32xf32> to vector<128x32xf32>
    %16 = vector.extract_strided_slice %13 {offsets = [1, 0, 0], sizes = [1, 128, 32], strides = [1, 1, 1]} : vector<8x128x32xf32> to vector<1x128x32xf32>
    %17 = vector.shape_cast %16 : vector<1x128x32xf32> to vector<128x32xf32>
    %18 = arith.maximumf %15, %17 : vector<128x32xf32>
    %19 = vector.extract_strided_slice %13 {offsets = [2, 0, 0], sizes = [1, 128, 32], strides = [1, 1, 1]} : vector<8x128x32xf32> to vector<1x128x32xf32>
    %20 = vector.shape_cast %19 : vector<1x128x32xf32> to vector<128x32xf32>
    %21 = arith.maximumf %18, %20 : vector<128x32xf32>
    %22 = vector.extract_strided_slice %13 {offsets = [3, 0, 0], sizes = [1, 128, 32], strides = [1, 1, 1]} : vector<8x128x32xf32> to vector<1x128x32xf32>
    %23 = vector.shape_cast %22 : vector<1x128x32xf32> to vector<128x32xf32>
    %24 = arith.maximumf %21, %23 : vector<128x32xf32>
    %25 = vector.extract_strided_slice %13 {offsets = [4, 0, 0], sizes = [1, 128, 32], strides = [1, 1, 1]} : vector<8x128x32xf32> to vector<1x128x32xf32>
    %26 = vector.shape_cast %25 : vector<1x128x32xf32> to vector<128x32xf32>
    %27 = arith.maximumf %24, %26 : vector<128x32xf32>
    %28 = vector.extract_strided_slice %13 {offsets = [5, 0, 0], sizes = [1, 128, 32], strides = [1, 1, 1]} : vector<8x128x32xf32> to vector<1x128x32xf32>
    %29 = vector.shape_cast %28 : vector<1x128x32xf32> to vector<128x32xf32>
    %30 = arith.maximumf %27, %29 : vector<128x32xf32>
    %31 = vector.extract_strided_slice %13 {offsets = [6, 0, 0], sizes = [1, 128, 32], strides = [1, 1, 1]} : vector<8x128x32xf32> to vector<1x128x32xf32>
    %32 = vector.shape_cast %31 : vector<1x128x32xf32> to vector<128x32xf32>
    %33 = arith.maximumf %30, %32 : vector<128x32xf32>
    %34 = vector.extract_strided_slice %13 {offsets = [7, 0, 0], sizes = [1, 128, 32], strides = [1, 1, 1]} : vector<8x128x32xf32> to vector<1x128x32xf32>
    %35 = vector.shape_cast %34 : vector<1x128x32xf32> to vector<128x32xf32>
    %36 = arith.maximumf %33, %35 : vector<128x32xf32>
    %c0_i32 = arith.constant 0 : i32
    %37 = arith.cmpi eq, %arg2, %c0_i32 : i32
    %38 = arith.extui %37 : i1 to i32
    %c0_i32_11 = arith.constant 0 : i32
    %39 = arith.cmpi ne, %38, %c0_i32_11 : i32
    scf.if %39 {
      %cst_18 = arith.constant 0xFF800000 : f32
      %46 = vector.broadcast %cst_18 : f32 to vector<128x32xf32>
      %c0_19 = arith.constant 0 : index
      %c0_20 = arith.constant 0 : index
      %47 = vector.load %arg9[%c0_19, %c0_20] : memref<128x32xf32, #tpu.memory_space<vmem>>, vector<128x32xf32>
      tpu.vector_store %arg9[%c0_19, %c0_20], %46 {strides = array<i32>} : memref<128x32xf32, #tpu.memory_space<vmem>>, vector<128x32xf32>,
    } else {
    }
    %c0_12 = arith.constant 0 : index
    %c0_13 = arith.constant 0 : index
    %40 = vector.load %arg9[%c0_12, %c0_13] : memref<128x32xf32, #tpu.memory_space<vmem>>, vector<128x32xf32>
    %41 = arith.maximumf %40, %36 : vector<128x32xf32>
    %c0_14 = arith.constant 0 : index
    %c0_15 = arith.constant 0 : index
    %42 = vector.load %arg9[%c0_14, %c0_15] : memref<128x32xf32, #tpu.memory_space<vmem>>, vector<128x32xf32>
    tpu.vector_store %arg9[%c0_14, %c0_15], %41 {strides = array<i32>} : memref<128x32xf32, #tpu.memory_space<vmem>>, vector<128x32xf32>,
    %c0_i32_16 = arith.constant 0 : i32
    %43 = arith.cmpi eq, %arg2, %c0_i32_16 : i32
    %44 = arith.extui %43 : i1 to i32
    %c0_i32_17 = arith.constant 0 : i32
    %45 = arith.cmpi ne, %44, %c0_i32_17 : i32
    scf.if %45 {
      %c0_18 = arith.constant 0 : index
      %c0_19 = arith.constant 0 : index
      %46 = vector.load %arg9[%c0_18, %c0_19] : memref<128x32xf32, #tpu.memory_space<vmem>>, vector<128x32xf32>
      %c0_20 = arith.constant 0 : index
      %c0_21 = arith.constant 0 : index
      %47 = vector.load %arg7[%c0_20, %c0_21] : memref<1x32xf32, #tpu.memory_space<vmem>>, vector<1x32xf32>
      %48 = vector.broadcast %47 : vector<1x32xf32> to vector<128x32xf32>
      %49 = arith.addf %46, %48 : vector<128x32xf32>
      %cst_22 = arith.constant 0.000000e+00 : f32
      %50 = vector.broadcast %cst_22 : f32 to vector<128x32xf32>
      %51 = arith.maximumf %49, %50 : vector<128x32xf32>
      %52 = tpu.transpose %51, [1, 0] : vector<128x32xf32> -> vector<32x128xf32>
      %c0_23 = arith.constant 0 : index
      %c0_24 = arith.constant 0 : index
      %c0_25 = arith.constant 0 : index
      %53 = vector.load %arg8[%c0_23, %c0_24, %c0_25] : memref<1x32x128xf32, #tpu.memory_space<vmem>>, vector<1x32x128xf32>
      %54 = vector.shape_cast %53 : vector<1x32x128xf32> to vector<32x128xf32>
      %55 = vector.shape_cast %52 : vector<32x128xf32> to vector<1x32x128xf32>
      tpu.vector_store %arg8[%c0_23, %c0_24, %c0_25], %55 {strides = array<i32>} : memref<1x32x128xf32, #tpu.memory_space<vmem>>, vector<1x32x128xf32>,
    } else {
    }
    return
  }
  func.func @transform_0(%arg0: i32, %arg1: i32, %arg2: i32) -> (i32, i32, i32, i32) {
    %c0_i32 = arith.constant 0 : i32
    %c0_i32_0 = arith.constant 0 : i32
    return %arg0, %arg2, %arg1, %c0_i32 : i32, i32, i32, i32
  }
  func.func @transform_1(%arg0: i32, %arg1: i32, %arg2: i32) -> (i32, i32) {
    %c0_i32 = arith.constant 0 : i32
    %c0_i32_0 = arith.constant 0 : i32
    %c0_i32_1 = arith.constant 0 : i32
    return %c0_i32, %c0_i32_0 : i32, i32
  }
  func.func @transform_2(%arg0: i32, %arg1: i32, %arg2: i32) -> (i32, i32) {
    %c0_i32 = arith.constant 0 : i32
    %c0_i32_0 = arith.constant 0 : i32
    %c0_i32_1 = arith.constant 0 : i32
    return %c0_i32, %c0_i32_0 : i32, i32
  }
  func.func @transform_3(%arg0: i32, %arg1: i32, %arg2: i32) -> (i32, i32) {
    %c0_i32 = arith.constant 0 : i32
    %c0_i32_0 = arith.constant 0 : i32
    %c0_i32_1 = arith.constant 0 : i32
    return %c0_i32, %c0_i32_0 : i32, i32
  }
  func.func @transform_4(%arg0: i32, %arg1: i32, %arg2: i32) -> (i32, i32) {
    %c0_i32 = arith.constant 0 : i32
    %c0_i32_0 = arith.constant 0 : i32
    %c0_i32_1 = arith.constant 0 : i32
    return %c0_i32, %c0_i32_0 : i32, i32
  }
  func.func @transform_5(%arg0: i32, %arg1: i32, %arg2: i32) -> (i32, i32, i32) {
    %c0_i32 = arith.constant 0 : i32
    %c0_i32_0 = arith.constant 0 : i32
    return %arg0, %c0_i32, %arg1 : i32, i32, i32
  }
}

</mosaic_0001>

<llo_original>
// kernel: custom-call.6
$region0: #{custom-call.6}
  %s0 = inlined_call_operand.vmem [shape: f32[2,64], index: 0, kind: output, shape index: {}]

// kernel: _lambda_.1
$region0: #{_lambda_.1}
  #allocation0 [shape = 'u32[]', space=smem, size = 0x4, offset = 0x4, fixed_abs, tag = 'smem constant byte address 0x4 - core index']
  #allocation1 [shape = 'u32[144,128]{1,0:T(1,128)}', space=vmem, size = 0x12000, scoped, tag = 'internal scratch']
  #allocation2 [shape = 'f32[128,32]{1,0:T(8,128)}', space=vmem, size = 0x10000, scoped, tag = 'scratch operand']
  %s0 = inlined_call_operand.vmem [shape: bf16[2,8,128,7], index: 0, kind: input, shape index: {}]
  %s1 = inlined_call_operand.vmem [shape: bf16[7,16], index: 1, kind: input, shape index: {}]
  %s2 = inlined_call_operand.vmem [shape: f32[1,16], index: 2, kind: input, shape index: {}]
  %s3 = inlined_call_operand.vmem [shape: bf16[16,32], index: 3, kind: input, shape index: {}]
  %s4 = inlined_call_operand.vmem [shape: f32[1,32], index: 4, kind: input, shape index: {}]
  %s5 = inlined_call_operand.vmem [shape: f32[2,32,128], index: 5, kind: output, shape index: {}]
  %s6 = sld [smem:[#allocation0]]
  $region61: #{_lambda_.1} parent=0
    _
  %s8 = ssub.s32 1, %s6
  %s9 = scalar_select 0, %s8, %s6
  loop: start=0, step=1, limit=4
  $region2: #{_lambda_.1} parent=0 // loop_pre_header
    _
  $region3: #{_lambda_.1} parent=0 // loop_header
    %s11 = sphi 0, %s15
    %p12 = scmp.ge.s32.totalorder %s11, 4
    %s18 = sphi 0, %s37
    %s19 = sphi 0, %s33
    %s20 = sphi 0, %s29
    %s21 = sphi 0, %s18
    %s22 = sphi 0, %s19
    %s23 = sphi 0, %s20
    %s24 = sphi 0, %s21
    %s25 = sphi 0, %s22
    %s26 = sphi 0, %s23
    %s44 = sphi 0, %s46
    %s47 = sphi 0, %s44
    %s48 = sphi 0, %s47
    %s64 = sphi 0, %s48
    %s68 = sphi 0, %s68
    %s70 = sphi 0, %s68
    %s71 = sphi 0, %s70
    %s85 = sphi 0, %s71
    %s89 = sphi 0, %s89
    %s91 = sphi 0, %s89
    %s92 = sphi 0, %s91
    %s106 = sphi 0, %s92
    %s110 = sphi 0, %s110
    %s112 = sphi 0, %s110
    %s113 = sphi 0, %s112
    %s127 = sphi 0, %s113
    %s131 = sphi 0, %s131
    %s133 = sphi 0, %s131
    %s134 = sphi 0, %s133
    %s148 = sphi 0, %s134
    %s156 = sphi 0, %s158
    %s159 = sphi 0, %s156
    %s160 = sphi 0, %s159
    %s176 = sphi 0, %s160
  $region4: #{_lambda_.1} parent=0 // loop_header_branch
    %14 = sbr.rel (%p12) target = $region8
  $region5: #{_lambda_.1} parent=0 // loop_body
    %s16 = ssub.s32 %s11, 1
    %s17 = ssub.s32 %s11, 2
    %s27 = sadd.s32 1, %s20
    %p28 = scmp.ge.s32.totalorder %s27, 1
    %s29 = scalar_select %p28, 0, %s27
    %s30 = sadd.s32 1, %s19
    %s31 = scalar_select %p28, %s30, %s19
    %p32 = scmp.ge.s32.totalorder %s31, 1
    %s33 = scalar_select %p32, 0, %s31
    %s34 = sadd.s32 1, %s18
    %s35 = scalar_select %p32, %s34, %s18
    %p36 = scmp.ge.s32.totalorder %s35, 2
    %s37 = scalar_select %p36, 0, %s35
    %s38 = ssub.s32 %s18, %s37
    %s39 = ssub.s32 %s20, %s29
    %s40 = sor.u32 %s38, %s39
    %s41 = ssub.s32 %s19, %s33
    %s42 = sor.u32 %s40, %s41
    %p43 = scmp.eq.s32.totalorder %s42, 0
    %s45 = sadd.s32 %s44, 1
    %s46 = scalar_select %p43, %s44, %s45
    %p49 = pneg %p43
    %p50 = scmp.eq.s32.totalorder %s11, 1
    %p51 = por %p49, %p50
    %p52 = scmp.ne.s32.totalorder %s44, %s47
    %p53 = scmp.eq.s32.totalorder %s11, 0
    %p54 = por %p52, %p53
    %p55 = scmp.ne.s32.totalorder %s44, %s47
    %p56 = scmp.eq.s32.totalorder %s16, 1
    %p57 = por %p55, %p56
    %p58 = scmp.ne.s32.totalorder %s47, %s48
    %p59 = scmp.eq.s32.totalorder %s16, 0
    %p60 = por %p58, %p59
    %p61 = scmp.ne.s32.totalorder %s47, %s48
    %p62 = scmp.eq.s32.totalorder %s17, 1
    %p63 = por %p61, %p62
    %p65 = scmp.ne.s32.totalorder %s48, %s64
    %p66 = scmp.eq.s32.totalorder %s17, 0
    %p67 = por %p65, %p66
    %s69 = sadd.s32 %s68, 1
    %p72 = scmp.eq.s32.totalorder %s11, 1
    %p73 = scmp.ne.s32.totalorder %s68, %s70
    %p74 = scmp.eq.s32.totalorder %s11, 0
    %p75 = por %p73, %p74
    %p76 = scmp.ne.s32.totalorder %s68, %s70
    %p77 = scmp.eq.s32.totalorder %s16, 1
    %p78 = por %p76, %p77
    %p79 = scmp.ne.s32.totalorder %s70, %s71
    %p80 = scmp.eq.s32.totalorder %s16, 0
    %p81 = por %p79, %p80
    %p82 = scmp.ne.s32.totalorder %s70, %s71
    %p83 = scmp.eq.s32.totalorder %s17, 1
    %p84 = por %p82, %p83
    %p86 = scmp.ne.s32.totalorder %s71, %s85
    %p87 = scmp.eq.s32.totalorder %s17, 0
    %p88 = por %p86, %p87
    %s90 = sadd.s32 %s89, 1
    %p93 = scmp.eq.s32.totalorder %s11, 1
    %p94 = scmp.ne.s32.totalorder %s89, %s91
    %p95 = scmp.eq.s32.totalorder %s11, 0
    %p96 = por %p94, %p95
    %p97 = scmp.ne.s32.totalorder %s89, %s91
    %p98 = scmp.eq.s32.totalorder %s16, 1
    %p99 = por %p97, %p98
    %p100 = scmp.ne.s32.totalorder %s91, %s92
    %p101 = scmp.eq.s32.totalorder %s16, 0
    %p102 = por %p100, %p101
    %p103 = scmp.ne.s32.totalorder %s91, %s92
    %p104 = scmp.eq.s32.totalorder %s17, 1
    %p105 = por %p103, %p104
    %p107 = scmp.ne.s32.totalorder %s92, %s106
    %p108 = scmp.eq.s32.totalorder %s17, 0
    %p109 = por %p107, %p108
    %s111 = sadd.s32 %s110, 1
    %p114 = scmp.eq.s32.totalorder %s11, 1
    %p115 = scmp.ne.s32.totalorder %s110, %s112
    %p116 = scmp.eq.s32.totalorder %s11, 0
    %p117 = por %p115, %p116
    %p118 = scmp.ne.s32.totalorder %s110, %s112
    %p119 = scmp.eq.s32.totalorder %s16, 1
    %p120 = por %p118, %p119
    %p121 = scmp.ne.s32.totalorder %s112, %s113
    %p122 = scmp.eq.s32.totalorder %s16, 0
    %p123 = por %p121, %p122
    %p124 = scmp.ne.s32.totalorder %s112, %s113
    %p125 = scmp.eq.s32.totalorder %s17, 1
    %p126 = por %p124, %p125
    %p128 = scmp.ne.s32.totalorder %s113, %s127
    %p129 = scmp.eq.s32.totalorder %s17, 0
    %p130 = por %p128, %p129
    %s132 = sadd.s32 %s131, 1
    %p135 = scmp.eq.s32.totalorder %s11, 1
    %p136 = scmp.ne.s32.totalorder %s131, %s133
    %p137 = scmp.eq.s32.totalorder %s11, 0
    %p138 = por %p136, %p137
    %p139 = scmp.ne.s32.totalorder %s131, %s133
    %p140 = scmp.eq.s32.totalorder %s16, 1
    %p141 = por %p139, %p140
    %p142 = scmp.ne.s32.totalorder %s133, %s134
    %p143 = scmp.eq.s32.totalorder %s16, 0
    %p144 = por %p142, %p143
    %p145 = scmp.ne.s32.totalorder %s133, %s134
    %p146 = scmp.eq.s32.totalorder %s17, 1
    %p147 = por %p145, %p146
    %p149 = scmp.ne.s32.totalorder %s134, %s148
    %p150 = scmp.eq.s32.totalorder %s17, 0
    %p151 = por %p149, %p150
    %s152 = ssub.s32 %s18, %s37
    %s153 = ssub.s32 %s19, %s33
    %s154 = sor.u32 %s152, %s153
    %p155 = scmp.eq.s32.totalorder %s154, 0
    %s157 = sadd.s32 %s156, 1
    %s158 = scalar_select %p155, %s156, %s157
    %p161 = pneg %p155
    %p162 = scmp.eq.s32.totalorder %s11, 1
    %p163 = por %p161, %p162
    %p164 = scmp.ne.s32.totalorder %s156, %s159
    %p165 = scmp.eq.s32.totalorder %s11, 0
    %p166 = por %p164, %p165
    %p167 = scmp.ne.s32.totalorder %s156, %s159
    %p168 = scmp.eq.s32.totalorder %s16, 1
    %p169 = por %p167, %p168
    %p170 = scmp.ne.s32.totalorder %s159, %s160
    %p171 = scmp.eq.s32.totalorder %s16, 0
    %p172 = por %p170, %p171
    %p173 = scmp.ne.s32.totalorder %s159, %s160
    %p174 = scmp.eq.s32.totalorder %s17, 1
    %p175 = por %p173, %p174
    %p177 = scmp.ne.s32.totalorder %s160, %s176
    %p178 = scmp.eq.s32.totalorder %s17, 0
    %p179 = por %p177, %p178
    %p180 = scmp.le.s32.totalorder 1, %s11
    %p181 = scmp.lt.s32.totalorder %s11, 3
    %p182 = pnand %p180, %p181
    %p183 = pneg %p182
    // Predicated region
    $region9: #{_lambda_.1} parent=5 // pred_check
      _
    $region10: #{_lambda_.1} parent=5 // pred_check_branch
      %185 = sbr.rel (%p182) target = $region12
    $region11: #{_lambda_.1} parent=5 // pred_region
      %s186 = ssub.s32 %s11, 1
      // Predicated region
      $region13: #{_lambda_.1} parent=11 // pred_check
        %p187 = pneg %p81
      $region14: #{_lambda_.1} parent=11 // pred_check_branch
        %189 = sbr.rel (%p187) target = $region16
      $region15: #{_lambda_.1} parent=11 // pred_region
        _
      $region16: #{_lambda_.1} parent=11 // pred_fallthru
        _
      // Predicated region
      $region17: #{_lambda_.1} parent=11 // pred_check
        %p190 = pneg %p102
      $region18: #{_lambda_.1} parent=11 // pred_check_branch
        %192 = sbr.rel (%p190) target = $region20
      $region19: #{_lambda_.1} parent=11 // pred_region
        _
      $region20: #{_lambda_.1} parent=11 // pred_fallthru
        _
      // Predicated region
      $region21: #{_lambda_.1} parent=11 // pred_check
        %p193 = pneg %p123
      $region22: #{_lambda_.1} parent=11 // pred_check_branch
        %195 = sbr.rel (%p193) target = $region24
      $region23: #{_lambda_.1} parent=11 // pred_region
        _
      $region24: #{_lambda_.1} parent=11 // pred_fallthru
        _
      // Predicated region
      $region25: #{_lambda_.1} parent=11 // pred_check
        %p196 = pneg %p144
      $region26: #{_lambda_.1} parent=11 // pred_check_branch
        %198 = sbr.rel (%p196) target = $region28
      $region27: #{_lambda_.1} parent=11 // pred_region
        _
      $region28: #{_lambda_.1} parent=11 // pred_fallthru
        _
    $region12: #{_lambda_.1} parent=5 // pred_fallthru
      _
    %p199 = scmp.lt.s32.totalorder %s11, 2
    // Predicated region
    $region29: #{_lambda_.1} parent=5 // pred_check
      %p200 = pneg %p199
    $region30: #{_lambda_.1} parent=5 // pred_check_branch
      %202 = sbr.rel (%p200) target = $region32
    $region31: #{_lambda_.1} parent=5 // pred_region
      // Predicated region
      $region33: #{_lambda_.1} parent=31 // pred_check
        %p203 = pneg %p54
      $region34: #{_lambda_.1} parent=31 // pred_check_branch
        %205 = sbr.rel (%p203) target = $region36
      $region35: #{_lambda_.1} parent=31 // pred_region
        %s206 = smul.u32 8, %s20
        %s207 = smul.u32 16, %s19
        %p208 = scmp.lt.s32.totalorder %s18, 1
        %s209 = scalar_select %p208, %s18, 1
        %p210 = scmp.lt.s32.totalorder %s206, 7
        %s211 = scalar_select %p210, %s206, 7
        %p212 = scmp.lt.s32.totalorder %s207, 15
        %s213 = scalar_select %p212, %s207, 15
        %s214 = smul.addr %s211, 16
        %s215 = sadd.s32 %s213, %s214
        %s216 = smul.addr %s209, 128
        %s217 = sadd.s32 %s215, %s216
        %s218 = smul.addr %s217, 4
        %s219 = scalar_lea.vmem %s0, %s218
        %s220 = smul.u32 8, %s20
        %s221 = smul.u32 16, %s19
      $region36: #{_lambda_.1} parent=31 // pred_fallthru
        _
    $region32: #{_lambda_.1} parent=5 // pred_fallthru
      _
    %p222 = scmp.le.s32.totalorder 1, %s11
    %p223 = scmp.lt.s32.totalorder %s11, 3
    %p224 = pnand %p222, %p223
    %p225 = pneg %p224
    // Predicated region
    $region37: #{_lambda_.1} parent=5 // pred_check
      _
    $region38: #{_lambda_.1} parent=5 // pred_check_branch
      %227 = sbr.rel (%p224) target = $region40
    $region39: #{_lambda_.1} parent=5 // pred_region
      %s228 = ssub.s32 %s11, 1
      %s229 = smul.u32 8, %s23
      %s230 = smul.u32 16, %s22
      %p231 = scmp.lt.s32.totalorder %s21, 1
      %s232 = scalar_select %p231, %s21, 1
      %p233 = scmp.lt.s32.totalorder %s229, 7
      %s234 = scalar_select %p233, %s229, 7
      %p235 = scmp.lt.s32.totalorder %s230, 15
      %s236 = scalar_select %p235, %s230, 15
      %s237 = smul.addr %s234, 16
      %s238 = sadd.s32 %s236, %s237
      %s239 = smul.addr %s232, 128
      %s240 = sadd.s32 %s238, %s239
      %s241 = smul.addr %s240, 4
      %s242 = scalar_lea.vmem %s0, %s241
      %p243 = pneg %p60
      %p244 = pneg %p57
      %p245 = pneg %p81
      %p246 = pneg %p78
      %p247 = pneg %p102
      %p248 = pneg %p99
      %p249 = pneg %p123
      %p250 = pneg %p120
      %p251 = pneg %p144
      %p252 = pneg %p141
      %p253 = pneg %p172
      %p254 = pneg %p169
      %p255 = scmp.lt.s32.totalorder %s21, 1
      %s256 = scalar_select %p255, %s21, 1
      %p257 = scmp.lt.s32.totalorder %s22, 0
      %s258 = scalar_select %p257, %s22, 0
      %s259 = smul.addr %s256, 4
      %s260 = sadd.s32 %s258, %s259
      %s261 = smul.addr %s260, 8
      %s262 = scalar_lea.vmem %s5, %s261
      %s263 = smul.u32 8, %s23
      %s264 = smul.u32 16, %s22
      %p265 = scmp.lt.s32.totalorder %s21, 1
      %s266 = scalar_select %p265, %s21, 1
      %p267 = scmp.lt.s32.totalorder %s263, 7
      %s268 = scalar_select %p267, %s263, 7
      %p269 = scmp.lt.s32.totalorder %s264, 15
      %s270 = scalar_select %p269, %s264, 15
      %s271 = smul.addr %s268, 16
      %s272 = sadd.s32 %s270, %s271
      %s273 = smul.addr %s266, 128
      %s274 = sadd.s32 %s272, %s273
      %s275 = smul.addr %s274, 4
      %s276 = scalar_lea.vmem %s0, %s275
      %s277 = smul.u32 8, %s23
      %s278 = smul.u32 16, %s22
      %p279 = scmp.lt.s32.totalorder %s21, 1
      %s280 = scalar_select %p279, %s21, 1
      %p281 = scmp.lt.s32.totalorder %s22, 0
      %s282 = scalar_select %p281, %s22, 0
      %s283 = smul.addr %s280, 4
      %s284 = sadd.s32 %s282, %s283
      %s285 = smul.addr %s284, 8
      %s286 = scalar_lea.vmem %s5, %s285
      %v288 = vld [vmem:[%s276] sm:$0xf]
      %v289 = vld [vmem:[%s276 + $0x4] sm:$0xf]
      %v290 = vld [vmem:[%s276 + $0x8] sm:$0xf]
      %v291 = vld [vmem:[%s276 + $0xc] sm:$0xf]
      %v292 = vld [vmem:[%s276 + $0x10] sm:$0xf]
      %v293 = vld [vmem:[%s276 + $0x14] sm:$0xf]
      %v294 = vld [vmem:[%s276 + $0x18] sm:$0xf]
      %v295 = vld [vmem:[%s276 + $0x1c] sm:$0xf]
      %v296 = vld [vmem:[%s276 + $0x20] sm:$0xf]
      %v297 = vld [vmem:[%s276 + $0x24] sm:$0xf]
      %v298 = vld [vmem:[%s276 + $0x28] sm:$0xf]
      %v299 = vld [vmem:[%s276 + $0x2c] sm:$0xf]
      %v300 = vld [vmem:[%s276 + $0x30] sm:$0xf]
      %v301 = vld [vmem:[%s276 + $0x34] sm:$0xf]
      %v302 = vld [vmem:[%s276 + $0x38] sm:$0xf]
      %v303 = vld [vmem:[%s276 + $0x3c] sm:$0xf]
      %v304 = vld [vmem:[%s276 + $0x40] sm:$0xf]
      %v305 = vld [vmem:[%s276 + $0x44] sm:$0xf]
      %v306 = vld [vmem:[%s276 + $0x48] sm:$0xf]
      %v307 = vld [vmem:[%s276 + $0x4c] sm:$0xf]
      %v308 = vld [vmem:[%s276 + $0x50] sm:$0xf]
      %v309 = vld [vmem:[%s276 + $0x54] sm:$0xf]
      %v310 = vld [vmem:[%s276 + $0x58] sm:$0xf]
      %v311 = vld [vmem:[%s276 + $0x5c] sm:$0xf]
      %v312 = vld [vmem:[%s276 + $0x60] sm:$0xf]
      %v313 = vld [vmem:[%s276 + $0x64] sm:$0xf]
      %v314 = vld [vmem:[%s276 + $0x68] sm:$0xf]
      %v315 = vld [vmem:[%s276 + $0x6c] sm:$0xf]
      %v316 = vld [vmem:[%s276 + $0x70] sm:$0xf]
      %v317 = vld [vmem:[%s276 + $0x74] sm:$0xf]
      %v318 = vld [vmem:[%s276 + $0x78] sm:$0xf]
      %v319 = vld [vmem:[%s276 + $0x7c] sm:$0xf]
      %v320 = vld [vmem:[%s276 + $0x80] sm:$0xf]
      %v321 = vld [vmem:[%s276 + $0x84] sm:$0xf]
      %v322 = vld [vmem:[%s276 + $0x88] sm:$0xf]
      %v323 = vld [vmem:[%s276 + $0x8c] sm:$0xf]
      %v324 = vld [vmem:[%s276 + $0x90] sm:$0xf]
      %v325 = vld [vmem:[%s276 + $0x94] sm:$0xf]
      %v326 = vld [vmem:[%s276 + $0x98] sm:$0xf]
      %v327 = vld [vmem:[%s276 + $0x9c] sm:$0xf]
      %v328 = vld [vmem:[%s276 + $0xa0] sm:$0xf]
      %v329 = vld [vmem:[%s276 + $0xa4] sm:$0xf]
      %v330 = vld [vmem:[%s276 + $0xa8] sm:$0xf]
      %v331 = vld [vmem:[%s276 + $0xac] sm:$0xf]
      %v332 = vld [vmem:[%s276 + $0xb0] sm:$0xf]
      %v333 = vld [vmem:[%s276 + $0xb4] sm:$0xf]
      %v334 = vld [vmem:[%s276 + $0xb8] sm:$0xf]
      %v335 = vld [vmem:[%s276 + $0xbc] sm:$0xf]
      %v336 = vld [vmem:[%s276 + $0xc0] sm:$0xf]
      %v337 = vld [vmem:[%s276 + $0xc4] sm:$0xf]
      %v338 = vld [vmem:[%s276 + $0xc8] sm:$0xf]
      %v339 = vld [vmem:[%s276 + $0xcc] sm:$0xf]
      %v340 = vld [vmem:[%s276 + $0xd0] sm:$0xf]
      %v341 = vld [vmem:[%s276 + $0xd4] sm:$0xf]
      %v342 = vld [vmem:[%s276 + $0xd8] sm:$0xf]
      %v343 = vld [vmem:[%s276 + $0xdc] sm:$0xf]
      %v344 = vld [vmem:[%s276 + $0xe0] sm:$0xf]
      %v345 = vld [vmem:[%s276 + $0xe4] sm:$0xf]
      %v346 = vld [vmem:[%s276 + $0xe8] sm:$0xf]
      %v347 = vld [vmem:[%s276 + $0xec] sm:$0xf]
      %v348 = vld [vmem:[%s276 + $0xf0] sm:$0xf]
      %v349 = vld [vmem:[%s276 + $0xf4] sm:$0xf]
      %v350 = vld [vmem:[%s276 + $0xf8] sm:$0xf]
      %v351 = vld [vmem:[%s276 + $0xfc] sm:$0xf]
      %v352 = vld [vmem:[%s276 + $0x100] sm:$0xf]
      %v353 = vld [vmem:[%s276 + $0x104] sm:$0xf]
      %v354 = vld [vmem:[%s276 + $0x108] sm:$0xf]
      %v355 = vld [vmem:[%s276 + $0x10c] sm:$0xf]
      %v356 = vld [vmem:[%s276 + $0x110] sm:$0xf]
      %v357 = vld [vmem:[%s276 + $0x114] sm:$0xf]
      %v358 = vld [vmem:[%s276 + $0x118] sm:$0xf]
      %v359 = vld [vmem:[%s276 + $0x11c] sm:$0xf]
      %v360 = vld [vmem:[%s276 + $0x120] sm:$0xf]
      %v361 = vld [vmem:[%s276 + $0x124] sm:$0xf]
      %v362 = vld [vmem:[%s276 + $0x128] sm:$0xf]
      %v363 = vld [vmem:[%s276 + $0x12c] sm:$0xf]
      %v364 = vld [vmem:[%s276 + $0x130] sm:$0xf]
      %v365 = vld [vmem:[%s276 + $0x134] sm:$0xf]
      %v366 = vld [vmem:[%s276 + $0x138] sm:$0xf]
      %v367 = vld [vmem:[%s276 + $0x13c] sm:$0xf]
      %v368 = vld [vmem:[%s276 + $0x140] sm:$0xf]
      %v369 = vld [vmem:[%s276 + $0x144] sm:$0xf]
      %v370 = vld [vmem:[%s276 + $0x148] sm:$0xf]
      %v371 = vld [vmem:[%s276 + $0x14c] sm:$0xf]
      %v372 = vld [vmem:[%s276 + $0x150] sm:$0xf]
      %v373 = vld [vmem:[%s276 + $0x154] sm:$0xf]
      %v374 = vld [vmem:[%s276 + $0x158] sm:$0xf]
      %v375 = vld [vmem:[%s276 + $0x15c] sm:$0xf]
      %v376 = vld [vmem:[%s276 + $0x160] sm:$0xf]
      %v377 = vld [vmem:[%s276 + $0x164] sm:$0xf]
      %v378 = vld [vmem:[%s276 + $0x168] sm:$0xf]
      %v379 = vld [vmem:[%s276 + $0x16c] sm:$0xf]
      %v380 = vld [vmem:[%s276 + $0x170] sm:$0xf]
      %v381 = vld [vmem:[%s276 + $0x174] sm:$0xf]
      %v382 = vld [vmem:[%s276 + $0x178] sm:$0xf]
      %v383 = vld [vmem:[%s276 + $0x17c] sm:$0xf]
      %v384 = vld [vmem:[%s276 + $0x180] sm:$0xf]
      %v385 = vld [vmem:[%s276 + $0x184] sm:$0xf]
      %v386 = vld [vmem:[%s276 + $0x188] sm:$0xf]
      %v387 = vld [vmem:[%s276 + $0x18c] sm:$0xf]
      %v388 = vld [vmem:[%s276 + $0x190] sm:$0xf]
      %v389 = vld [vmem:[%s276 + $0x194] sm:$0xf]
      %v390 = vld [vmem:[%s276 + $0x198] sm:$0xf]
      %v391 = vld [vmem:[%s276 + $0x19c] sm:$0xf]
      %v392 = vld [vmem:[%s276 + $0x1a0] sm:$0xf]
      %v393 = vld [vmem:[%s276 + $0x1a4] sm:$0xf]
      %v394 = vld [vmem:[%s276 + $0x1a8] sm:$0xf]
      %v395 = vld [vmem:[%s276 + $0x1ac] sm:$0xf]
      %v396 = vld [vmem:[%s276 + $0x1b0] sm:$0xf]
      %v397 = vld [vmem:[%s276 + $0x1b4] sm:$0xf]
      %v398 = vld [vmem:[%s276 + $0x1b8] sm:$0xf]
      %v399 = vld [vmem:[%s276 + $0x1bc] sm:$0xf]
      %v400 = vld [vmem:[%s276 + $0x1c0] sm:$0xf]
      %v401 = vld [vmem:[%s276 + $0x1c4] sm:$0xf]
      %v402 = vld [vmem:[%s276 + $0x1c8] sm:$0xf]
      %v403 = vld [vmem:[%s276 + $0x1cc] sm:$0xf]
      %v404 = vld [vmem:[%s276 + $0x1d0] sm:$0xf]
      %v405 = vld [vmem:[%s276 + $0x1d4] sm:$0xf]
      %v406 = vld [vmem:[%s276 + $0x1d8] sm:$0xf]
      %v407 = vld [vmem:[%s276 + $0x1dc] sm:$0xf]
      %v408 = vld [vmem:[%s276 + $0x1e0] sm:$0xf]
      %v409 = vld [vmem:[%s276 + $0x1e4] sm:$0xf]
      %v410 = vld [vmem:[%s276 + $0x1e8] sm:$0xf]
      %v411 = vld [vmem:[%s276 + $0x1ec] sm:$0xf]
      %v412 = vld [vmem:[%s276 + $0x1f0] sm:$0xf]
      %v413 = vld [vmem:[%s276 + $0x1f4] sm:$0xf]
      %v414 = vld [vmem:[%s276 + $0x1f8] sm:$0xf]
      %v415 = vld [vmem:[%s276 + $0x1fc] sm:$0xf]
      %v416 = vld [vmem:[%s1] sm:$0xf]
      %v417 = vld [vmem:[%s2] sm:$0x1]
      %v419 = vlaneseq
      %v420 = vshrl.u32 %v419, 7
      %v421 = vsub.s32 0, %v420
      %v422 = vrot.slane %v417, %v421
      %v552 = vunpack.c.l.b16 %v288
      %v553 = vunpack.c.l.b16 %v289
      %v554 = vunpack.c.l.b16 %v290
      %v555 = vunpack.c.l.b16 %v291
      %v556 = vunpack.c.l.b16 %v292
      %v557 = vunpack.c.l.b16 %v293
      %v558 = vunpack.c.l.b16 %v294
      %v559 = vunpack.c.l.b16 %v295
      %v560 = vunpack.c.l.b16 %v296
      %v561 = vunpack.c.l.b16 %v297
      %v562 = vunpack.c.l.b16 %v298
      %v563 = vunpack.c.l.b16 %v299
      %v564 = vunpack.c.l.b16 %v300
      %v565 = vunpack.c.l.b16 %v301
      %v566 = vunpack.c.l.b16 %v302
      %v567 = vunpack.c.l.b16 %v303
      %v568 = vunpack.c.l.b16 %v304
      %v569 = vunpack.c.l.b16 %v305
      %v570 = vunpack.c.l.b16 %v306
      %v571 = vunpack.c.l.b16 %v307
      %v572 = vunpack.c.l.b16 %v308
      %v573 = vunpack.c.l.b16 %v309
      %v574 = vunpack.c.l.b16 %v310
      %v575 = vunpack.c.l.b16 %v311
      %v576 = vunpack.c.l.b16 %v312
      %v577 = vunpack.c.l.b16 %v313
      %v578 = vunpack.c.l.b16 %v314
      %v579 = vunpack.c.l.b16 %v315
      %v580 = vunpack.c.l.b16 %v316
      %v581 = vunpack.c.l.b16 %v317
      %v582 = vunpack.c.l.b16 %v318
      %v583 = vunpack.c.l.b16 %v319
      %v584 = vunpack.c.l.b16 %v320
      %v585 = vunpack.c.l.b16 %v321
      %v586 = vunpack.c.l.b16 %v322
      %v587 = vunpack.c.l.b16 %v323
      %v588 = vunpack.c.l.b16 %v324
      %v589 = vunpack.c.l.b16 %v325
      %v590 = vunpack.c.l.b16 %v326
      %v591 = vunpack.c.l.b16 %v327
      %v592 = vunpack.c.l.b16 %v328
      %v593 = vunpack.c.l.b16 %v329
      %v594 = vunpack.c.l.b16 %v330
      %v595 = vunpack.c.l.b16 %v331
      %v596 = vunpack.c.l.b16 %v332
      %v597 = vunpack.c.l.b16 %v333
      %v598 = vunpack.c.l.b16 %v334
      %v599 = vunpack.c.l.b16 %v335
      %v600 = vunpack.c.l.b16 %v336
      %v601 = vunpack.c.l.b16 %v337
      %v602 = vunpack.c.l.b16 %v338
      %v603 = vunpack.c.l.b16 %v339
      %v604 = vunpack.c.l.b16 %v340
      %v605 = vunpack.c.l.b16 %v341
      %v606 = vunpack.c.l.b16 %v342
      %v607 = vunpack.c.l.b16 %v343
      %v608 = vunpack.c.l.b16 %v344
      %v609 = vunpack.c.l.b16 %v345
      %v610 = vunpack.c.l.b16 %v346
      %v611 = vunpack.c.l.b16 %v347
      %v612 = vunpack.c.l.b16 %v348
      %v613 = vunpack.c.l.b16 %v349
      %v614 = vunpack.c.l.b16 %v350
      %v615 = vunpack.c.l.b16 %v351
      %v616 = vunpack.c.l.b16 %v352
      %v617 = vunpack.c.l.b16 %v353
      %v618 = vunpack.c.l.b16 %v354
      %v619 = vunpack.c.l.b16 %v355
      %v620 = vunpack.c.l.b16 %v356
      %v621 = vunpack.c.l.b16 %v357
      %v622 = vunpack.c.l.b16 %v358
      %v623 = vunpack.c.l.b16 %v359
      %v624 = vunpack.c.l.b16 %v360
      %v625 = vunpack.c.l.b16 %v361
      %v626 = vunpack.c.l.b16 %v362
      %v627 = vunpack.c.l.b16 %v363
      %v628 = vunpack.c.l.b16 %v364
      %v629 = vunpack.c.l.b16 %v365
      %v630 = vunpack.c.l.b16 %v366
      %v631 = vunpack.c.l.b16 %v367
      %v632 = vunpack.c.l.b16 %v368
      %v633 = vunpack.c.l.b16 %v369
      %v634 = vunpack.c.l.b16 %v370
      %v635 = vunpack.c.l.b16 %v371
      %v636 = vunpack.c.l.b16 %v372
      %v637 = vunpack.c.l.b16 %v373
      %v638 = vunpack.c.l.b16 %v374
      %v639 = vunpack.c.l.b16 %v375
      %v640 = vunpack.c.l.b16 %v376
      %v641 = vunpack.c.l.b16 %v377
      %v642 = vunpack.c.l.b16 %v378
      %v643 = vunpack.c.l.b16 %v379
      %v644 = vunpack.c.l.b16 %v380
      %v645 = vunpack.c.l.b16 %v381
      %v646 = vunpack.c.l.b16 %v382
      %v647 = vunpack.c.l.b16 %v383
      %v648 = vunpack.c.l.b16 %v384
      %v649 = vunpack.c.l.b16 %v385
      %v650 = vunpack.c.l.b16 %v386
      %v651 = vunpack.c.l.b16 %v387
      %v652 = vunpack.c.l.b16 %v388
      %v653 = vunpack.c.l.b16 %v389
      %v654 = vunpack.c.l.b16 %v390
      %v655 = vunpack.c.l.b16 %v391
      %v656 = vunpack.c.l.b16 %v392
      %v657 = vunpack.c.l.b16 %v393
      %v658 = vunpack.c.l.b16 %v394
      %v659 = vunpack.c.l.b16 %v395
      %v660 = vunpack.c.l.b16 %v396
      %v661 = vunpack.c.l.b16 %v397
      %v662 = vunpack.c.l.b16 %v398
      %v663 = vunpack.c.l.b16 %v399
      %v664 = vunpack.c.l.b16 %v400
      %v665 = vunpack.c.l.b16 %v401
      %v666 = vunpack.c.l.b16 %v402
      %v667 = vunpack.c.l.b16 %v403
      %v668 = vunpack.c.l.b16 %v404
      %v669 = vunpack.c.l.b16 %v405
      %v670 = vunpack.c.l.b16 %v406
      %v671 = vunpack.c.l.b16 %v407
      %v672 = vunpack.c.l.b16 %v408
      %v673 = vunpack.c.l.b16 %v409
      %v674 = vunpack.c.l.b16 %v410
      %v675 = vunpack.c.l.b16 %v411
      %v676 = vunpack.c.l.b16 %v412
      %v677 = vunpack.c.l.b16 %v413
      %v678 = vunpack.c.l.b16 %v414
      %v679 = vunpack.c.l.b16 %v415
      %v680 = vpack.c.b16 %v553, %v552
      %v681 = vpack.c.b16 %v555, %v554
      %v682 = vpack.c.b16 %v557, %v556
      %v683 = vpack.c.b16 %v559, %v558
      %v684 = vpack.c.b16 %v561, %v560
      %v685 = vpack.c.b16 %v563, %v562
      %v686 = vpack.c.b16 %v565, %v564
      %v687 = vpack.c.b16 %v567, %v566
      %v688 = vpack.c.b16 %v569, %v568
      %v689 = vpack.c.b16 %v571, %v570
      %v690 = vpack.c.b16 %v573, %v572
      %v691 = vpack.c.b16 %v575, %v574
      %v692 = vpack.c.b16 %v577, %v576
      %v693 = vpack.c.b16 %v579, %v578
      %v694 = vpack.c.b16 %v581, %v580
      %v695 = vpack.c.b16 %v583, %v582
      %v696 = vpack.c.b16 %v585, %v584
      %v697 = vpack.c.b16 %v587, %v586
      %v698 = vpack.c.b16 %v589, %v588
      %v699 = vpack.c.b16 %v591, %v590
      %v700 = vpack.c.b16 %v593, %v592
      %v701 = vpack.c.b16 %v595, %v594
      %v702 = vpack.c.b16 %v597, %v596
      %v703 = vpack.c.b16 %v599, %v598
      %v704 = vpack.c.b16 %v601, %v600
      %v705 = vpack.c.b16 %v603, %v602
      %v706 = vpack.c.b16 %v605, %v604
      %v707 = vpack.c.b16 %v607, %v606
      %v708 = vpack.c.b16 %v609, %v608
      %v709 = vpack.c.b16 %v611, %v610
      %v710 = vpack.c.b16 %v613, %v612
      %v711 = vpack.c.b16 %v615, %v614
      %v712 = vpack.c.b16 %v617, %v616
      %v713 = vpack.c.b16 %v619, %v618
      %v714 = vpack.c.b16 %v621, %v620
      %v715 = vpack.c.b16 %v623, %v622
      %v716 = vpack.c.b16 %v625, %v624
      %v717 = vpack.c.b16 %v627, %v626
      %v718 = vpack.c.b16 %v629, %v628
      %v719 = vpack.c.b16 %v631, %v630
      %v720 = vpack.c.b16 %v633, %v632
      %v721 = vpack.c.b16 %v635, %v634
      %v722 = vpack.c.b16 %v637, %v636
      %v723 = vpack.c.b16 %v639, %v638
      %v724 = vpack.c.b16 %v641, %v640
      %v725 = vpack.c.b16 %v643, %v642
      %v726 = vpack.c.b16 %v645, %v644
      %v727 = vpack.c.b16 %v647, %v646
      %v728 = vpack.c.b16 %v649, %v648
      %v729 = vpack.c.b16 %v651, %v650
      %v730 = vpack.c.b16 %v653, %v652
      %v731 = vpack.c.b16 %v655, %v654
      %v732 = vpack.c.b16 %v657, %v656
      %v733 = vpack.c.b16 %v659, %v658
      %v734 = vpack.c.b16 %v661, %v660
      %v735 = vpack.c.b16 %v663, %v662
      %v736 = vpack.c.b16 %v665, %v664
      %v737 = vpack.c.b16 %v667, %v666
      %v738 = vpack.c.b16 %v669, %v668
      %v739 = vpack.c.b16 %v671, %v670
      %v740 = vpack.c.b16 %v673, %v672
      %v741 = vpack.c.b16 %v675, %v674
      %v742 = vpack.c.b16 %v677, %v676
      %v743 = vpack.c.b16 %v679, %v678
      %vm744 = vcmask 56320
      %v746 = vsel %vm744, %v680, 0
      %v749 = vsel %vm744, %v681, 0
      %v752 = vsel %vm744, %v682, 0
      %v755 = vsel %vm744, %v683, 0
      %v758 = vsel %vm744, %v684, 0
      %v761 = vsel %vm744, %v685, 0
      %v764 = vsel %vm744, %v686, 0
      %v767 = vsel %vm744, %v687, 0
      %v770 = vsel %vm744, %v688, 0
      %v773 = vsel %vm744, %v689, 0
      %v776 = vsel %vm744, %v690, 0
      %v779 = vsel %vm744, %v691, 0
      %v782 = vsel %vm744, %v692, 0
      %v785 = vsel %vm744, %v693, 0
      %v788 = vsel %vm744, %v694, 0
      %v791 = vsel %vm744, %v695, 0
      %v794 = vsel %vm744, %v696, 0
      %v797 = vsel %vm744, %v697, 0
      %v800 = vsel %vm744, %v698, 0
      %v803 = vsel %vm744, %v699, 0
      %v806 = vsel %vm744, %v700, 0
      %v809 = vsel %vm744, %v701, 0
      %v812 = vsel %vm744, %v702, 0
      %v815 = vsel %vm744, %v703, 0
      %v818 = vsel %vm744, %v704, 0
      %v821 = vsel %vm744, %v705, 0
      %v824 = vsel %vm744, %v706, 0
      %v827 = vsel %vm744, %v707, 0
      %v830 = vsel %vm744, %v708, 0
      %v833 = vsel %vm744, %v709, 0
      %v836 = vsel %vm744, %v710, 0
      %v839 = vsel %vm744, %v711, 0
      %v842 = vsel %vm744, %v712, 0
      %v845 = vsel %vm744, %v713, 0
      %v848 = vsel %vm744, %v714, 0
      %v851 = vsel %vm744, %v715, 0
      %v854 = vsel %vm744, %v716, 0
      %v857 = vsel %vm744, %v717, 0
      %v860 = vsel %vm744, %v718, 0
      %v863 = vsel %vm744, %v719, 0
      %v866 = vsel %vm744, %v720, 0
      %v869 = vsel %vm744, %v721, 0
      %v872 = vsel %vm744, %v722, 0
      %v875 = vsel %vm744, %v723, 0
      %v878 = vsel %vm744, %v724, 0
      %v881 = vsel %vm744, %v725, 0
      %v884 = vsel %vm744, %v726, 0
      %v887 = vsel %vm744, %v727, 0
      %v890 = vsel %vm744, %v728, 0
      %v893 = vsel %vm744, %v729, 0
      %v896 = vsel %vm744, %v730, 0
      %v899 = vsel %vm744, %v731, 0
      %v902 = vsel %vm744, %v732, 0
      %v905 = vsel %vm744, %v733, 0
      %v908 = vsel %vm744, %v734, 0
      %v911 = vsel %vm744, %v735, 0
      %v914 = vsel %vm744, %v736, 0
      %v917 = vsel %vm744, %v737, 0
      %v920 = vsel %vm744, %v738, 0
      %v923 = vsel %vm744, %v739, 0
      %v926 = vsel %vm744, %v740, 0
      %v929 = vsel %vm744, %v741, 0
      %v932 = vsel %vm744, %v742, 0
      %v935 = vsel %vm744, %v743, 0
      %vm937 = vcmask 1042432
      %vm938 = vcmask 1043456
      %v939 = vsel %vm937, 4294967295, 65535
      %v940 = vsel %vm938, %v939, 0
      %v942 = vand.u32 %v416, %v940
      %944 = vmatprep.subr.bf16.mxu0 0
      %945 = vmatpush1.bf16.msra.mxu0 %v942
      %946 = vmatprep.subr.bf16.mxu0 0
      %947 = vmatpush1.bf16.msra.mxu0 0
      %948 = vmatprep.subr.bf16.mxu0 0
      %949 = vmatpush1.bf16.msra.mxu0 0
      %950 = vmatprep.subr.bf16.mxu0 0
      %951 = vmatpush1.bf16.msra.mxu0 0
      %952 = vmatprep.subr.bf16.mxu0 0
      %953 = vmatpush1.bf16.msra.mxu0 0
      %954 = vmatprep.subr.bf16.mxu0 0
      %955 = vmatpush1.bf16.msra.mxu0 0
      %956 = vmatprep.subr.bf16.mxu0 0
      %957 = vmatpush1.bf16.msra.mxu0 0
      %958 = vmatprep.subr.bf16.mxu0 0
      %959 = vmatpush1.bf16.msra.mxu0 0
      %960 = vmatprep.subr.bf16.mxu0 0
      %961 = vmatpush1.bf16.msra.mxu0 0
      %962 = vmatprep.subr.bf16.mxu0 0
      %963 = vmatpush1.bf16.msra.mxu0 0
      %964 = vmatprep.subr.bf16.mxu0 0
      %965 = vmatpush1.bf16.msra.mxu0 0
      %966 = vmatprep.subr.bf16.mxu0 0
      %967 = vmatpush1.bf16.msra.mxu0 0
      %968 = vmatprep.subr.bf16.mxu0 0
      %969 = vmatpush1.bf16.msra.mxu0 0
      %970 = vmatprep.subr.bf16.mxu0 0
      %971 = vmatpush1.bf16.msra.mxu0 0
      %972 = vmatprep.subr.bf16.mxu0 0
      %973 = vmatpush1.bf16.msra.mxu0 0
      %974 = vmatprep.subr.bf16.mxu0 0
      %975 = vmatpush1.bf16.msra.mxu0 0
      %976 = vmatprep.mubr.bf16.mxu0 0
      %977 = vmatmul.mubr.bf16.gmra.mrb[0].mxu0 %v746
      %v978 = vpop.f32.mrb[0].mxu0
      %v979 = vadd.f32 %v422, %v978
      %v980 = vpop.f32.mrb[0].mxu0
      %v981 = vpop.f32.mrb[0].mxu0
      %v982 = vadd.f32 %v422, %v981
      %v983 = vpop.f32.mrb[0].mxu0
      %984 = vmatprep.mubr.bf16.mxu0 0
      %985 = vmatmul.mubr.bf16.gmra.mrb[0].mxu0 %v749
      %v986 = vpop.f32.mrb[0].mxu0
      %v987 = vadd.f32 %v422, %v986
      %v988 = vpop.f32.mrb[0].mxu0
      %v989 = vpop.f32.mrb[0].mxu0
      %v990 = vadd.f32 %v422, %v989
      %v991 = vpop.f32.mrb[0].mxu0
      %992 = vmatprep.mubr.bf16.mxu0 0
      %993 = vmatmul.mubr.bf16.gmra.mrb[0].mxu0 %v752
      %v994 = vpop.f32.mrb[0].mxu0
      %v995 = vadd.f32 %v422, %v994
      %v996 = vpop.f32.mrb[0].mxu0
      %v997 = vpop.f32.mrb[0].mxu0
      %v998 = vadd.f32 %v422, %v997
      %v999 = vpop.f32.mrb[0].mxu0
      %1000 = vmatprep.mubr.bf16.mxu0 0
      %1001 = vmatmul.mubr.bf16.gmra.mrb[0].mxu0 %v755
      %v1002 = vpop.f32.mrb[0].mxu0
      %v1003 = vadd.f32 %v422, %v1002
      %v1004 = vpop.f32.mrb[0].mxu0
      %v1005 = vpop.f32.mrb[0].mxu0
      %v1006 = vadd.f32 %v422, %v1005
      %v1007 = vpop.f32.mrb[0].mxu0
      %1008 = vmatprep.mubr.bf16.mxu0 0
      %1009 = vmatmul.mubr.bf16.gmra.mrb[0].mxu0 %v758
      %v1010 = vpop.f32.mrb[0].mxu0
      %v1011 = vadd.f32 %v422, %v1010
      %v1012 = vpop.f32.mrb[0].mxu0
      %v1013 = vpop.f32.mrb[0].mxu0
      %v1014 = vadd.f32 %v422, %v1013
      %v1015 = vpop.f32.mrb[0].mxu0
      %1016 = vmatprep.mubr.bf16.mxu0 0
      %1017 = vmatmul.mubr.bf16.gmra.mrb[0].mxu0 %v761
      %v1018 = vpop.f32.mrb[0].mxu0
      %v1019 = vadd.f32 %v422, %v1018
      %v1020 = vpop.f32.mrb[0].mxu0
      %v1021 = vpop.f32.mrb[0].mxu0
      %v1022 = vadd.f32 %v422, %v1021
      %v1023 = vpop.f32.mrb[0].mxu0
      %1024 = vmatprep.mubr.bf16.mxu0 0
      %1025 = vmatmul.mubr.bf16.gmra.mrb[0].mxu0 %v764
      %v1026 = vpop.f32.mrb[0].mxu0
      %v1027 = vadd.f32 %v422, %v1026
      %v1028 = vpop.f32.mrb[0].mxu0
      %v1029 = vpop.f32.mrb[0].mxu0
      %v1030 = vadd.f32 %v422, %v1029
      %v1031 = vpop.f32.mrb[0].mxu0
      %1032 = vmatprep.mubr.bf16.mxu0 0
      %1033 = vmatmul.mubr.bf16.gmra.mrb[0].mxu0 %v767
      %v1034 = vpop.f32.mrb[0].mxu0
      %v1035 = vadd.f32 %v422, %v1034
      %v1036 = vpop.f32.mrb[0].mxu0
      %v1037 = vpop.f32.mrb[0].mxu0
      %v1038 = vadd.f32 %v422, %v1037
      %v1039 = vpop.f32.mrb[0].mxu0
      %1040 = vmatprep.mubr.bf16.mxu0 0
      %1041 = vmatmul.mubr.bf16.gmra.mrb[0].mxu0 %v770
      %v1042 = vpop.f32.mrb[0].mxu0
      %v1043 = vadd.f32 %v422, %v1042
      %v1044 = vpop.f32.mrb[0].mxu0
      %v1045 = vpop.f32.mrb[0].mxu0
      %v1046 = vadd.f32 %v422, %v1045
      %v1047 = vpop.f32.mrb[0].mxu0
      %1048 = vmatprep.mubr.bf16.mxu0 0
      %1049 = vmatmul.mubr.bf16.gmra.mrb[0].mxu0 %v773
      %v1050 = vpop.f32.mrb[0].mxu0
      %v1051 = vadd.f32 %v422, %v1050
      %v1052 = vpop.f32.mrb[0].mxu0
      %v1053 = vpop.f32.mrb[0].mxu0
      %v1054 = vadd.f32 %v422, %v1053
      %v1055 = vpop.f32.mrb[0].mxu0
      %1056 = vmatprep.mubr.bf16.mxu0 0
      %1057 = vmatmul.mubr.bf16.gmra.mrb[0].mxu0 %v776
      %v1058 = vpop.f32.mrb[0].mxu0
      %v1059 = vadd.f32 %v422, %v1058
      %v1060 = vpop.f32.mrb[0].mxu0
      %v1061 = vpop.f32.mrb[0].mxu0
      %v1062 = vadd.f32 %v422, %v1061
      %v1063 = vpop.f32.mrb[0].mxu0
      %1064 = vmatprep.mubr.bf16.mxu0 0
      %1065 = vmatmul.mubr.bf16.gmra.mrb[0].mxu0 %v779
      %v1066 = vpop.f32.mrb[0].mxu0
      %v1067 = vadd.f32 %v422, %v1066
      %v1068 = vpop.f32.mrb[0].mxu0
      %v1069 = vpop.f32.mrb[0].mxu0
      %v1070 = vadd.f32 %v422, %v1069
      %v1071 = vpop.f32.mrb[0].mxu0
      %1072 = vmatprep.mubr.bf16.mxu0 0
      %1073 = vmatmul.mubr.bf16.gmra.mrb[0].mxu0 %v782
      %v1074 = vpop.f32.mrb[0].mxu0
      %v1075 = vadd.f32 %v422, %v1074
      %v1076 = vpop.f32.mrb[0].mxu0
      %v1077 = vpop.f32.mrb[0].mxu0
      %v1078 = vadd.f32 %v422, %v1077
      %v1079 = vpop.f32.mrb[0].mxu0
      %1080 = vmatprep.mubr.bf16.mxu0 0
      %1081 = vmatmul.mubr.bf16.gmra.mrb[0].mxu0 %v785
      %v1082 = vpop.f32.mrb[0].mxu0
      %v1083 = vadd.f32 %v422, %v1082
      %v1084 = vpop.f32.mrb[0].mxu0
      %v1085 = vpop.f32.mrb[0].mxu0
      %v1086 = vadd.f32 %v422, %v1085
      %v1087 = vpop.f32.mrb[0].mxu0
      %1088 = vmatprep.mubr.bf16.mxu0 0
      %1089 = vmatmul.mubr.bf16.gmra.mrb[0].mxu0 %v788
      %v1090 = vpop.f32.mrb[0].mxu0
      %v1091 = vadd.f32 %v422, %v1090
      %v1092 = vpop.f32.mrb[0].mxu0
      %v1093 = vpop.f32.mrb[0].mxu0
      %v1094 = vadd.f32 %v422, %v1093
      %v1095 = vpop.f32.mrb[0].mxu0
      %1096 = vmatprep.mubr.bf16.mxu0 0
      %1097 = vmatmul.mubr.bf16.gmra.mrb[0].mxu0 %v791
      %v1098 = vpop.f32.mrb[0].mxu0
      %v1099 = vadd.f32 %v422, %v1098
      %v1100 = vpop.f32.mrb[0].mxu0
      %v1101 = vpop.f32.mrb[0].mxu0
      %v1102 = vadd.f32 %v422, %v1101
      %v1103 = vpop.f32.mrb[0].mxu0
      %1104 = vmatprep.mubr.bf16.mxu0 0
      %1105 = vmatmul.mubr.bf16.gmra.mrb[0].mxu0 %v794
      %v1106 = vpop.f32.mrb[0].mxu0
      %v1107 = vadd.f32 %v422, %v1106
      %v1108 = vpop.f32.mrb[0].mxu0
      %v1109 = vpop.f32.mrb[0].mxu0
      %v1110 = vadd.f32 %v422, %v1109
      %v1111 = vpop.f32.mrb[0].mxu0
      %1112 = vmatprep.mubr.bf16.mxu0 0
      %1113 = vmatmul.mubr.bf16.gmra.mrb[0].mxu0 %v797
      %v1114 = vpop.f32.mrb[0].mxu0
      %v1115 = vadd.f32 %v422, %v1114
      %v1116 = vpop.f32.mrb[0].mxu0
      %v1117 = vpop.f32.mrb[0].mxu0
      %v1118 = vadd.f32 %v422, %v1117
      %v1119 = vpop.f32.mrb[0].mxu0
      %1120 = vmatprep.mubr.bf16.mxu0 0
      %1121 = vmatmul.mubr.bf16.gmra.mrb[0].mxu0 %v800
      %v1122 = vpop.f32.mrb[0].mxu0
      %v1123 = vadd.f32 %v422, %v1122
      %v1124 = vpop.f32.mrb[0].mxu0
      %v1125 = vpop.f32.mrb[0].mxu0
      %v1126 = vadd.f32 %v422, %v1125
      %v1127 = vpop.f32.mrb[0].mxu0
      %1128 = vmatprep.mubr.bf16.mxu0 0
      %1129 = vmatmul.mubr.bf16.gmra.mrb[0].mxu0 %v803
      %v1130 = vpop.f32.mrb[0].mxu0
      %v1131 = vadd.f32 %v422, %v1130
      %v1132 = vpop.f32.mrb[0].mxu0
      %v1133 = vpop.f32.mrb[0].mxu0
      %v1134 = vadd.f32 %v422, %v1133
      %v1135 = vpop.f32.mrb[0].mxu0
      %1136 = vmatprep.mubr.bf16.mxu0 0
      %1137 = vmatmul.mubr.bf16.gmra.mrb[0].mxu0 %v806
      %v1138 = vpop.f32.mrb[0].mxu0
      %v1139 = vadd.f32 %v422, %v1138
      %v1140 = vpop.f32.mrb[0].mxu0
      %v1141 = vpop.f32.mrb[0].mxu0
      %v1142 = vadd.f32 %v422, %v1141
      %v1143 = vpop.f32.mrb[0].mxu0
      %1144 = vmatprep.mubr.bf16.mxu0 0
      %1145 = vmatmul.mubr.bf16.gmra.mrb[0].mxu0 %v809
      %v1146 = vpop.f32.mrb[0].mxu0
      %v1147 = vadd.f32 %v422, %v1146
      %v1148 = vpop.f32.mrb[0].mxu0
      %v1149 = vpop.f32.mrb[0].mxu0
      %v1150 = vadd.f32 %v422, %v1149
      %v1151 = vpop.f32.mrb[0].mxu0
      %1152 = vmatprep.mubr.bf16.mxu0 0
      %1153 = vmatmul.mubr.bf16.gmra.mrb[0].mxu0 %v812
      %v1154 = vpop.f32.mrb[0].mxu0
      %v1155 = vadd.f32 %v422, %v1154
      %v1156 = vpop.f32.mrb[0].mxu0
      %v1157 = vpop.f32.mrb[0].mxu0
      %v1158 = vadd.f32 %v422, %v1157
      %v1159 = vpop.f32.mrb[0].mxu0
      %1160 = vmatprep.mubr.bf16.mxu0 0
      %1161 = vmatmul.mubr.bf16.gmra.mrb[0].mxu0 %v815
      %v1162 = vpop.f32.mrb[0].mxu0
      %v1163 = vadd.f32 %v422, %v1162
      %v1164 = vpop.f32.mrb[0].mxu0
      %v1165 = vpop.f32.mrb[0].mxu0
      %v1166 = vadd.f32 %v422, %v1165
      %v1167 = vpop.f32.mrb[0].mxu0
      %1168 = vmatprep.mubr.bf16.mxu0 0
      %1169 = vmatmul.mubr.bf16.gmra.mrb[0].mxu0 %v818
      %v1170 = vpop.f32.mrb[0].mxu0
      %v1171 = vadd.f32 %v422, %v1170
      %v1172 = vpop.f32.mrb[0].mxu0
      %v1173 = vpop.f32.mrb[0].mxu0
      %v1174 = vadd.f32 %v422, %v1173
      %v1175 = vpop.f32.mrb[0].mxu0
      %1176 = vmatprep.mubr.bf16.mxu0 0
      %1177 = vmatmul.mubr.bf16.gmra.mrb[0].mxu0 %v821
      %v1178 = vpop.f32.mrb[0].mxu0
      %v1179 = vadd.f32 %v422, %v1178
      %v1180 = vpop.f32.mrb[0].mxu0
      %v1181 = vpop.f32.mrb[0].mxu0
      %v1182 = vadd.f32 %v422, %v1181
      %v1183 = vpop.f32.mrb[0].mxu0
      %1184 = vmatprep.mubr.bf16.mxu0 0
      %1185 = vmatmul.mubr.bf16.gmra.mrb[0].mxu0 %v824
      %v1186 = vpop.f32.mrb[0].mxu0
      %v1187 = vadd.f32 %v422, %v1186
      %v1188 = vpop.f32.mrb[0].mxu0
      %v1189 = vpop.f32.mrb[0].mxu0
      %v1190 = vadd.f32 %v422, %v1189
      %v1191 = vpop.f32.mrb[0].mxu0
      %1192 = vmatprep.mubr.bf16.mxu0 0
      %1193 = vmatmul.mubr.bf16.gmra.mrb[0].mxu0 %v827
      %v1194 = vpop.f32.mrb[0].mxu0
      %v1195 = vadd.f32 %v422, %v1194
      %v1196 = vpop.f32.mrb[0].mxu0
      %v1197 = vpop.f32.mrb[0].mxu0
      %v1198 = vadd.f32 %v422, %v1197
      %v1199 = vpop.f32.mrb[0].mxu0
      %1200 = vmatprep.mubr.bf16.mxu0 0
      %1201 = vmatmul.mubr.bf16.gmra.mrb[0].mxu0 %v830
      %v1202 = vpop.f32.mrb[0].mxu0
      %v1203 = vadd.f32 %v422, %v1202
      %v1204 = vpop.f32.mrb[0].mxu0
      %v1205 = vpop.f32.mrb[0].mxu0
      %v1206 = vadd.f32 %v422, %v1205
      %v1207 = vpop.f32.mrb[0].mxu0
      %1208 = vmatprep.mubr.bf16.mxu0 0
      %1209 = vmatmul.mubr.bf16.gmra.mrb[0].mxu0 %v833
      %v1210 = vpop.f32.mrb[0].mxu0
      %v1211 = vadd.f32 %v422, %v1210
      %v1212 = vpop.f32.mrb[0].mxu0
      %v1213 = vpop.f32.mrb[0].mxu0
      %v1214 = vadd.f32 %v422, %v1213
      %v1215 = vpop.f32.mrb[0].mxu0
      %1216 = vmatprep.mubr.bf16.mxu0 0
      %1217 = vmatmul.mubr.bf16.gmra.mrb[0].mxu0 %v836
      %v1218 = vpop.f32.mrb[0].mxu0
      %v1219 = vadd.f32 %v422, %v1218
      %v1220 = vpop.f32.mrb[0].mxu0
      %v1221 = vpop.f32.mrb[0].mxu0
      %v1222 = vadd.f32 %v422, %v1221
      %v1223 = vpop.f32.mrb[0].mxu0
      %1224 = vmatprep.mubr.bf16.mxu0 0
      %1225 = vmatmul.mubr.bf16.gmra.mrb[0].mxu0 %v839
      %v1226 = vpop.f32.mrb[0].mxu0
      %v1227 = vadd.f32 %v422, %v1226
      %v1228 = vpop.f32.mrb[0].mxu0
      %v1229 = vpop.f32.mrb[0].mxu0
      %v1230 = vadd.f32 %v422, %v1229
      %v1231 = vpop.f32.mrb[0].mxu0
      %1232 = vmatprep.mubr.bf16.mxu0 0
      %1233 = vmatmul.mubr.bf16.gmra.mrb[0].mxu0 %v842
      %v1234 = vpop.f32.mrb[0].mxu0
      %v1235 = vadd.f32 %v422, %v1234
      %v1236 = vpop.f32.mrb[0].mxu0
      %v1237 = vpop.f32.mrb[0].mxu0
      %v1238 = vadd.f32 %v422, %v1237
      %v1239 = vpop.f32.mrb[0].mxu0
      %1240 = vmatprep.mubr.bf16.mxu0 0
      %1241 = vmatmul.mubr.bf16.gmra.mrb[0].mxu0 %v845
      %v1242 = vpop.f32.mrb[0].mxu0
      %v1243 = vadd.f32 %v422, %v1242
      %v1244 = vpop.f32.mrb[0].mxu0
      %v1245 = vpop.f32.mrb[0].mxu0
      %v1246 = vadd.f32 %v422, %v1245
      %v1247 = vpop.f32.mrb[0].mxu0
      %1248 = vmatprep.mubr.bf16.mxu0 0
      %1249 = vmatmul.mubr.bf16.gmra.mrb[0].mxu0 %v848
      %v1250 = vpop.f32.mrb[0].mxu0
      %v1251 = vadd.f32 %v422, %v1250
      %v1252 = vpop.f32.mrb[0].mxu0
      %v1253 = vpop.f32.mrb[0].mxu0
      %v1254 = vadd.f32 %v422, %v1253
      %v1255 = vpop.f32.mrb[0].mxu0
      %1256 = vmatprep.mubr.bf16.mxu0 0
      %1257 = vmatmul.mubr.bf16.gmra.mrb[0].mxu0 %v851
      %v1258 = vpop.f32.mrb[0].mxu0
      %v1259 = vadd.f32 %v422, %v1258
      %v1260 = vpop.f32.mrb[0].mxu0
      %v1261 = vpop.f32.mrb[0].mxu0
      %v1262 = vadd.f32 %v422, %v1261
      %v1263 = vpop.f32.mrb[0].mxu0
      %1264 = vmatprep.mubr.bf16.mxu0 0
      %1265 = vmatmul.mubr.bf16.gmra.mrb[0].mxu0 %v854
      %v1266 = vpop.f32.mrb[0].mxu0
      %v1267 = vadd.f32 %v422, %v1266
      %v1268 = vpop.f32.mrb[0].mxu0
      %v1269 = vpop.f32.mrb[0].mxu0
      %v1270 = vadd.f32 %v422, %v1269
      %v1271 = vpop.f32.mrb[0].mxu0
      %1272 = vmatprep.mubr.bf16.mxu0 0
      %1273 = vmatmul.mubr.bf16.gmra.mrb[0].mxu0 %v857
      %v1274 = vpop.f32.mrb[0].mxu0
      %v1275 = vadd.f32 %v422, %v1274
      %v1276 = vpop.f32.mrb[0].mxu0
      %v1277 = vpop.f32.mrb[0].mxu0
      %v1278 = vadd.f32 %v422, %v1277
      %v1279 = vpop.f32.mrb[0].mxu0
      %1280 = vmatprep.mubr.bf16.mxu0 0
      %1281 = vmatmul.mubr.bf16.gmra.mrb[0].mxu0 %v860
      %v1282 = vpop.f32.mrb[0].mxu0
      %v1283 = vadd.f32 %v422, %v1282
      %v1284 = vpop.f32.mrb[0].mxu0
      %v1285 = vpop.f32.mrb[0].mxu0
      %v1286 = vadd.f32 %v422, %v1285
      %v1287 = vpop.f32.mrb[0].mxu0
      %1288 = vmatprep.mubr.bf16.mxu0 0
      %1289 = vmatmul.mubr.bf16.gmra.mrb[0].mxu0 %v863
      %v1290 = vpop.f32.mrb[0].mxu0
      %v1291 = vadd.f32 %v422, %v1290
      %v1292 = vpop.f32.mrb[0].mxu0
      %v1293 = vpop.f32.mrb[0].mxu0
      %v1294 = vadd.f32 %v422, %v1293
      %v1295 = vpop.f32.mrb[0].mxu0
      %1296 = vmatprep.mubr.bf16.mxu0 0
      %1297 = vmatmul.mubr.bf16.gmra.mrb[0].mxu0 %v866
      %v1298 = vpop.f32.mrb[0].mxu0
      %v1299 = vadd.f32 %v422, %v1298
      %v1300 = vpop.f32.mrb[0].mxu0
      %v1301 = vpop.f32.mrb[0].mxu0
      %v1302 = vadd.f32 %v422, %v1301
      %v1303 = vpop.f32.mrb[0].mxu0
      %1304 = vmatprep.mubr.bf16.mxu0 0
      %1305 = vmatmul.mubr.bf16.gmra.mrb[0].mxu0 %v869
      %v1306 = vpop.f32.mrb[0].mxu0
      %v1307 = vadd.f32 %v422, %v1306
      %v1308 = vpop.f32.mrb[0].mxu0
      %v1309 = vpop.f32.mrb[0].mxu0
      %v1310 = vadd.f32 %v422, %v1309
      %v1311 = vpop.f32.mrb[0].mxu0
      %1312 = vmatprep.mubr.bf16.mxu0 0
      %1313 = vmatmul.mubr.bf16.gmra.mrb[0].mxu0 %v872
      %v1314 = vpop.f32.mrb[0].mxu0
      %v1315 = vadd.f32 %v422, %v1314
      %v1316 = vpop.f32.mrb[0].mxu0
      %v1317 = vpop.f32.mrb[0].mxu0
      %v1318 = vadd.f32 %v422, %v1317
      %v1319 = vpop.f32.mrb[0].mxu0
      %1320 = vmatprep.mubr.bf16.mxu0 0
      %1321 = vmatmul.mubr.bf16.gmra.mrb[0].mxu0 %v875
      %v1322 = vpop.f32.mrb[0].mxu0
      %v1323 = vadd.f32 %v422, %v1322
      %v1324 = vpop.f32.mrb[0].mxu0
      %v1325 = vpop.f32.mrb[0].mxu0
      %v1326 = vadd.f32 %v422, %v1325
      %v1327 = vpop.f32.mrb[0].mxu0
      %1328 = vmatprep.mubr.bf16.mxu0 0
      %1329 = vmatmul.mubr.bf16.gmra.mrb[0].mxu0 %v878
      %v1330 = vpop.f32.mrb[0].mxu0
      %v1331 = vadd.f32 %v422, %v1330
      %v1332 = vpop.f32.mrb[0].mxu0
      %v1333 = vpop.f32.mrb[0].mxu0
      %v1334 = vadd.f32 %v422, %v1333
      %v1335 = vpop.f32.mrb[0].mxu0
      %1336 = vmatprep.mubr.bf16.mxu0 0
      %1337 = vmatmul.mubr.bf16.gmra.mrb[0].mxu0 %v881
      %v1338 = vpop.f32.mrb[0].mxu0
      %v1339 = vadd.f32 %v422, %v1338
      %v1340 = vpop.f32.mrb[0].mxu0
      %v1341 = vpop.f32.mrb[0].mxu0
      %v1342 = vadd.f32 %v422, %v1341
      %v1343 = vpop.f32.mrb[0].mxu0
      %1344 = vmatprep.mubr.bf16.mxu0 0
      %1345 = vmatmul.mubr.bf16.gmra.mrb[0].mxu0 %v884
      %v1346 = vpop.f32.mrb[0].mxu0
      %v1347 = vadd.f32 %v422, %v1346
      %v1348 = vpop.f32.mrb[0].mxu0
      %v1349 = vpop.f32.mrb[0].mxu0
      %v1350 = vadd.f32 %v422, %v1349
      %v1351 = vpop.f32.mrb[0].mxu0
      %1352 = vmatprep.mubr.bf16.mxu0 0
      %1353 = vmatmul.mubr.bf16.gmra.mrb[0].mxu0 %v887
      %v1354 = vpop.f32.mrb[0].mxu0
      %v1355 = vadd.f32 %v422, %v1354
      %v1356 = vpop.f32.mrb[0].mxu0
      %v1357 = vpop.f32.mrb[0].mxu0
      %v1358 = vadd.f32 %v422, %v1357
      %v1359 = vpop.f32.mrb[0].mxu0
      %1360 = vmatprep.mubr.bf16.mxu0 0
      %1361 = vmatmul.mubr.bf16.gmra.mrb[0].mxu0 %v890
      %v1362 = vpop.f32.mrb[0].mxu0
      %v1363 = vadd.f32 %v422, %v1362
      %v1364 = vpop.f32.mrb[0].mxu0
      %v1365 = vpop.f32.mrb[0].mxu0
      %v1366 = vadd.f32 %v422, %v1365
      %v1367 = vpop.f32.mrb[0].mxu0
      %1368 = vmatprep.mubr.bf16.mxu0 0
      %1369 = vmatmul.mubr.bf16.gmra.mrb[0].mxu0 %v893
      %v1370 = vpop.f32.mrb[0].mxu0
      %v1371 = vadd.f32 %v422, %v1370
      %v1372 = vpop.f32.mrb[0].mxu0
      %v1373 = vpop.f32.mrb[0].mxu0
      %v1374 = vadd.f32 %v422, %v1373
      %v1375 = vpop.f32.mrb[0].mxu0
      %1376 = vmatprep.mubr.bf16.mxu0 0
      %1377 = vmatmul.mubr.bf16.gmra.mrb[0].mxu0 %v896
      %v1378 = vpop.f32.mrb[0].mxu0
      %v1379 = vadd.f32 %v422, %v1378
      %v1380 = vpop.f32.mrb[0].mxu0
      %v1381 = vpop.f32.mrb[0].mxu0
      %v1382 = vadd.f32 %v422, %v1381
      %v1383 = vpop.f32.mrb[0].mxu0
      %1384 = vmatprep.mubr.bf16.mxu0 0
      %1385 = vmatmul.mubr.bf16.gmra.mrb[0].mxu0 %v899
      %v1386 = vpop.f32.mrb[0].mxu0
      %v1387 = vadd.f32 %v422, %v1386
      %v1388 = vpop.f32.mrb[0].mxu0
      %v1389 = vpop.f32.mrb[0].mxu0
      %v1390 = vadd.f32 %v422, %v1389
      %v1391 = vpop.f32.mrb[0].mxu0
      %1392 = vmatprep.mubr.bf16.mxu0 0
      %1393 = vmatmul.mubr.bf16.gmra.mrb[0].mxu0 %v902
      %v1394 = vpop.f32.mrb[0].mxu0
      %v1395 = vadd.f32 %v422, %v1394
      %v1396 = vpop.f32.mrb[0].mxu0
      %v1397 = vpop.f32.mrb[0].mxu0
      %v1398 = vadd.f32 %v422, %v1397
      %v1399 = vpop.f32.mrb[0].mxu0
      %1400 = vmatprep.mubr.bf16.mxu0 0
      %1401 = vmatmul.mubr.bf16.gmra.mrb[0].mxu0 %v905
      %v1402 = vpop.f32.mrb[0].mxu0
      %v1403 = vadd.f32 %v422, %v1402
      %v1404 = vpop.f32.mrb[0].mxu0
      %v1405 = vpop.f32.mrb[0].mxu0
      %v1406 = vadd.f32 %v422, %v1405
      %v1407 = vpop.f32.mrb[0].mxu0
      %1408 = vmatprep.mubr.bf16.mxu0 0
      %1409 = vmatmul.mubr.bf16.gmra.mrb[0].mxu0 %v908
      %v1410 = vpop.f32.mrb[0].mxu0
      %v1411 = vadd.f32 %v422, %v1410
      %v1412 = vpop.f32.mrb[0].mxu0
      %v1413 = vpop.f32.mrb[0].mxu0
      %v1414 = vadd.f32 %v422, %v1413
      %v1415 = vpop.f32.mrb[0].mxu0
      %1416 = vmatprep.mubr.bf16.mxu0 0
      %1417 = vmatmul.mubr.bf16.gmra.mrb[0].mxu0 %v911
      %v1418 = vpop.f32.mrb[0].mxu0
      %v1419 = vadd.f32 %v422, %v1418
      %v1420 = vpop.f32.mrb[0].mxu0
      %v1421 = vpop.f32.mrb[0].mxu0
      %v1422 = vadd.f32 %v422, %v1421
      %v1423 = vpop.f32.mrb[0].mxu0
      %1424 = vmatprep.mubr.bf16.mxu0 0
      %1425 = vmatmul.mubr.bf16.gmra.mrb[0].mxu0 %v914
      %v1426 = vpop.f32.mrb[0].mxu0
      %v1427 = vadd.f32 %v422, %v1426
      %v1428 = vpop.f32.mrb[0].mxu0
      %v1429 = vpop.f32.mrb[0].mxu0
      %v1430 = vadd.f32 %v422, %v1429
      %v1431 = vpop.f32.mrb[0].mxu0
      %1432 = vmatprep.mubr.bf16.mxu0 0
      %1433 = vmatmul.mubr.bf16.gmra.mrb[0].mxu0 %v917
      %v1434 = vpop.f32.mrb[0].mxu0
      %v1435 = vadd.f32 %v422, %v1434
      %v1436 = vpop.f32.mrb[0].mxu0
      %v1437 = vpop.f32.mrb[0].mxu0
      %v1438 = vadd.f32 %v422, %v1437
      %v1439 = vpop.f32.mrb[0].mxu0
      %1440 = vmatprep.mubr.bf16.mxu0 0
      %1441 = vmatmul.mubr.bf16.gmra.mrb[0].mxu0 %v920
      %v1442 = vpop.f32.mrb[0].mxu0
      %v1443 = vadd.f32 %v422, %v1442
      %v1444 = vpop.f32.mrb[0].mxu0
      %v1445 = vpop.f32.mrb[0].mxu0
      %v1446 = vadd.f32 %v422, %v1445
      %v1447 = vpop.f32.mrb[0].mxu0
      %1448 = vmatprep.mubr.bf16.mxu0 0
      %1449 = vmatmul.mubr.bf16.gmra.mrb[0].mxu0 %v923
      %v1450 = vpop.f32.mrb[0].mxu0
      %v1451 = vadd.f32 %v422, %v1450
      %v1452 = vpop.f32.mrb[0].mxu0
      %v1453 = vpop.f32.mrb[0].mxu0
      %v1454 = vadd.f32 %v422, %v1453
      %v1455 = vpop.f32.mrb[0].mxu0
      %1456 = vmatprep.mubr.bf16.mxu0 0
      %1457 = vmatmul.mubr.bf16.gmra.mrb[0].mxu0 %v926
      %v1458 = vpop.f32.mrb[0].mxu0
      %v1459 = vadd.f32 %v422, %v1458
      %v1460 = vpop.f32.mrb[0].mxu0
      %v1461 = vpop.f32.mrb[0].mxu0
      %v1462 = vadd.f32 %v422, %v1461
      %v1463 = vpop.f32.mrb[0].mxu0
      %1464 = vmatprep.mubr.bf16.mxu0 0
      %1465 = vmatmul.mubr.bf16.gmra.mrb[0].mxu0 %v929
      %v1466 = vpop.f32.mrb[0].mxu0
      %v1467 = vadd.f32 %v422, %v1466
      %v1468 = vpop.f32.mrb[0].mxu0
      %v1469 = vpop.f32.mrb[0].mxu0
      %v1470 = vadd.f32 %v422, %v1469
      %v1471 = vpop.f32.mrb[0].mxu0
      %1472 = vmatprep.mubr.bf16.mxu0 0
      %1473 = vmatmul.mubr.bf16.gmra.mrb[0].mxu0 %v932
      %v1474 = vpop.f32.mrb[0].mxu0
      %v1475 = vadd.f32 %v422, %v1474
      %v1476 = vpop.f32.mrb[0].mxu0
      %v1477 = vpop.f32.mrb[0].mxu0
      %v1478 = vadd.f32 %v422, %v1477
      %v1479 = vpop.f32.mrb[0].mxu0
      %1480 = vmatprep.mubr.bf16.mxu0 0
      %1481 = vmatmul.mubr.bf16.gmra.mrb[0].mxu0 %v935
      %v1482 = vpop.f32.mrb[0].mxu0
      %v1483 = vadd.f32 %v422, %v1482
      %v1484 = vpop.f32.mrb[0].mxu0
      %v1485 = vpop.f32.mrb[0].mxu0
      %v1486 = vadd.f32 %v422, %v1485
      %v1487 = vpop.f32.mrb[0].mxu0
      %1488 = vdwg.mxu0
      %v1489 = vmax.f32 %v979, 0.0
      %v1490 = vmax.f32 %v982, 0.0
      %v1491 = vmax.f32 %v987, 0.0
      %v1492 = vmax.f32 %v990, 0.0
      %v1493 = vmax.f32 %v995, 0.0
      %v1494 = vmax.f32 %v998, 0.0
      %v1495 = vmax.f32 %v1003, 0.0
      %v1496 = vmax.f32 %v1006, 0.0
      %v1497 = vmax.f32 %v1011, 0.0
      %v1498 = vmax.f32 %v1014, 0.0
      %v1499 = vmax.f32 %v1019, 0.0
      %v1500 = vmax.f32 %v1022, 0.0
      %v1501 = vmax.f32 %v1027, 0.0
      %v1502 = vmax.f32 %v1030, 0.0
      %v1503 = vmax.f32 %v1035, 0.0
      %v1504 = vmax.f32 %v1038, 0.0
      %v1505 = vmax.f32 %v1043, 0.0
      %v1506 = vmax.f32 %v1046, 0.0
      %v1507 = vmax.f32 %v1051, 0.0
      %v1508 = vmax.f32 %v1054, 0.0
      %v1509 = vmax.f32 %v1059, 0.0
      %v1510 = vmax.f32 %v1062, 0.0
      %v1511 = vmax.f32 %v1067, 0.0
      %v1512 = vmax.f32 %v1070, 0.0
      %v1513 = vmax.f32 %v1075, 0.0
      %v1514 = vmax.f32 %v1078, 0.0
      %v1515 = vmax.f32 %v1083, 0.0
      %v1516 = vmax.f32 %v1086, 0.0
      %v1517 = vmax.f32 %v1091, 0.0
      %v1518 = vmax.f32 %v1094, 0.0
      %v1519 = vmax.f32 %v1099, 0.0
      %v1520 = vmax.f32 %v1102, 0.0
      %v1521 = vmax.f32 %v1107, 0.0
      %v1522 = vmax.f32 %v1110, 0.0
      %v1523 = vmax.f32 %v1115, 0.0
      %v1524 = vmax.f32 %v1118, 0.0
      %v1525 = vmax.f32 %v1123, 0.0
      %v1526 = vmax.f32 %v1126, 0.0
      %v1527 = vmax.f32 %v1131, 0.0
      %v1528 = vmax.f32 %v1134, 0.0
      %v1529 = vmax.f32 %v1139, 0.0
      %v1530 = vmax.f32 %v1142, 0.0
      %v1531 = vmax.f32 %v1147, 0.0
      %v1532 = vmax.f32 %v1150, 0.0
      %v1533 = vmax.f32 %v1155, 0.0
      %v1534 = vmax.f32 %v1158, 0.0
      %v1535 = vmax.f32 %v1163, 0.0
      %v1536 = vmax.f32 %v1166, 0.0
      %v1537 = vmax.f32 %v1171, 0.0
      %v1538 = vmax.f32 %v1174, 0.0
      %v1539 = vmax.f32 %v1179, 0.0
      %v1540 = vmax.f32 %v1182, 0.0
      %v1541 = vmax.f32 %v1187, 0.0
      %v1542 = vmax.f32 %v1190, 0.0
      %v1543 = vmax.f32 %v1195, 0.0
      %v1544 = vmax.f32 %v1198, 0.0
      %v1545 = vmax.f32 %v1203, 0.0
      %v1546 = vmax.f32 %v1206, 0.0
      %v1547 = vmax.f32 %v1211, 0.0
      %v1548 = vmax.f32 %v1214, 0.0
      %v1549 = vmax.f32 %v1219, 0.0
      %v1550 = vmax.f32 %v1222, 0.0
      %v1551 = vmax.f32 %v1227, 0.0
      %v1552 = vmax.f32 %v1230, 0.0
      %v1553 = vmax.f32 %v1235, 0.0
      %v1554 = vmax.f32 %v1238, 0.0
      %v1555 = vmax.f32 %v1243, 0.0
      %v1556 = vmax.f32 %v1246, 0.0
      %v1557 = vmax.f32 %v1251, 0.0
      %v1558 = vmax.f32 %v1254, 0.0
      %v1559 = vmax.f32 %v1259, 0.0
      %v1560 = vmax.f32 %v1262, 0.0
      %v1561 = vmax.f32 %v1267, 0.0
      %v1562 = vmax.f32 %v1270, 0.0
      %v1563 = vmax.f32 %v1275, 0.0
      %v1564 = vmax.f32 %v1278, 0.0
      %v1565 = vmax.f32 %v1283, 0.0
      %v1566 = vmax.f32 %v1286, 0.0
      %v1567 = vmax.f32 %v1291, 0.0
      %v1568 = vmax.f32 %v1294, 0.0
      %v1569 = vmax.f32 %v1299, 0.0
      %v1570 = vmax.f32 %v1302, 0.0
      %v1571 = vmax.f32 %v1307, 0.0
      %v1572 = vmax.f32 %v1310, 0.0
      %v1573 = vmax.f32 %v1315, 0.0
      %v1574 = vmax.f32 %v1318, 0.0
      %v1575 = vmax.f32 %v1323, 0.0
      %v1576 = vmax.f32 %v1326, 0.0
      %v1577 = vmax.f32 %v1331, 0.0
      %v1578 = vmax.f32 %v1334, 0.0
      %v1579 = vmax.f32 %v1339, 0.0
      %v1580 = vmax.f32 %v1342, 0.0
      %v1581 = vmax.f32 %v1347, 0.0
      %v1582 = vmax.f32 %v1350, 0.0
      %v1583 = vmax.f32 %v1355, 0.0
      %v1584 = vmax.f32 %v1358, 0.0
      %v1585 = vmax.f32 %v1363, 0.0
      %v1586 = vmax.f32 %v1366, 0.0
      %v1587 = vmax.f32 %v1371, 0.0
      %v1588 = vmax.f32 %v1374, 0.0
      %v1589 = vmax.f32 %v1379, 0.0
      %v1590 = vmax.f32 %v1382, 0.0
      %v1591 = vmax.f32 %v1387, 0.0
      %v1592 = vmax.f32 %v1390, 0.0
      %v1593 = vmax.f32 %v1395, 0.0
      %v1594 = vmax.f32 %v1398, 0.0
      %v1595 = vmax.f32 %v1403, 0.0
      %v1596 = vmax.f32 %v1406, 0.0
      %v1597 = vmax.f32 %v1411, 0.0
      %v1598 = vmax.f32 %v1414, 0.0
      %v1599 = vmax.f32 %v1419, 0.0
      %v1600 = vmax.f32 %v1422, 0.0
      %v1601 = vmax.f32 %v1427, 0.0
      %v1602 = vmax.f32 %v1430, 0.0
      %v1603 = vmax.f32 %v1435, 0.0
      %v1604 = vmax.f32 %v1438, 0.0
      %v1605 = vmax.f32 %v1443, 0.0
      %v1606 = vmax.f32 %v1446, 0.0
      %v1607 = vmax.f32 %v1451, 0.0
      %v1608 = vmax.f32 %v1454, 0.0
      %v1609 = vmax.f32 %v1459, 0.0
      %v1610 = vmax.f32 %v1462, 0.0
      %v1611 = vmax.f32 %v1467, 0.0
      %v1612 = vmax.f32 %v1470, 0.0
      %v1613 = vmax.f32 %v1475, 0.0
      %v1614 = vmax.f32 %v1478, 0.0
      %v1615 = vmax.f32 %v1483, 0.0
      %v1616 = vmax.f32 %v1486, 0.0
      %v1617 = vpack.c.bf16 %v1490, %v1489
      %v1618 = vpack.c.bf16 %v1492, %v1491
      %v1619 = vpack.c.bf16 %v1494, %v1493
      %v1620 = vpack.c.bf16 %v1496, %v1495
      %v1621 = vpack.c.bf16 %v1498, %v1497
      %v1622 = vpack.c.bf16 %v1500, %v1499
      %v1623 = vpack.c.bf16 %v1502, %v1501
      %v1624 = vpack.c.bf16 %v1504, %v1503
      %v1625 = vpack.c.bf16 %v1506, %v1505
      %v1626 = vpack.c.bf16 %v1508, %v1507
      %v1627 = vpack.c.bf16 %v1510, %v1509
      %v1628 = vpack.c.bf16 %v1512, %v1511
      %v1629 = vpack.c.bf16 %v1514, %v1513
      %v1630 = vpack.c.bf16 %v1516, %v1515
      %v1631 = vpack.c.bf16 %v1518, %v1517
      %v1632 = vpack.c.bf16 %v1520, %v1519
      %v1633 = vpack.c.bf16 %v1522, %v1521
      %v1634 = vpack.c.bf16 %v1524, %v1523
      %v1635 = vpack.c.bf16 %v1526, %v1525
      %v1636 = vpack.c.bf16 %v1528, %v1527
      %v1637 = vpack.c.bf16 %v1530, %v1529
      %v1638 = vpack.c.bf16 %v1532, %v1531
      %v1639 = vpack.c.bf16 %v1534, %v1533
      %v1640 = vpack.c.bf16 %v1536, %v1535
      %v1641 = vpack.c.bf16 %v1538, %v1537
      %v1642 = vpack.c.bf16 %v1540, %v1539
      %v1643 = vpack.c.bf16 %v1542, %v1541
      %v1644 = vpack.c.bf16 %v1544, %v1543
      %v1645 = vpack.c.bf16 %v1546, %v1545
      %v1646 = vpack.c.bf16 %v1548, %v1547
      %v1647 = vpack.c.bf16 %v1550, %v1549
      %v1648 = vpack.c.bf16 %v1552, %v1551
      %v1649 = vpack.c.bf16 %v1554, %v1553
      %v1650 = vpack.c.bf16 %v1556, %v1555
      %v1651 = vpack.c.bf16 %v1558, %v1557
      %v1652 = vpack.c.bf16 %v1560, %v1559
      %v1653 = vpack.c.bf16 %v1562, %v1561
      %v1654 = vpack.c.bf16 %v1564, %v1563
      %v1655 = vpack.c.bf16 %v1566, %v1565
      %v1656 = vpack.c.bf16 %v1568, %v1567
      %v1657 = vpack.c.bf16 %v1570, %v1569
      %v1658 = vpack.c.bf16 %v1572, %v1571
      %v1659 = vpack.c.bf16 %v1574, %v1573
      %v1660 = vpack.c.bf16 %v1576, %v1575
      %v1661 = vpack.c.bf16 %v1578, %v1577
      %v1662 = vpack.c.bf16 %v1580, %v1579
      %v1663 = vpack.c.bf16 %v1582, %v1581
      %v1664 = vpack.c.bf16 %v1584, %v1583
      %v1665 = vpack.c.bf16 %v1586, %v1585
      %v1666 = vpack.c.bf16 %v1588, %v1587
      %v1667 = vpack.c.bf16 %v1590, %v1589
      %v1668 = vpack.c.bf16 %v1592, %v1591
      %v1669 = vpack.c.bf16 %v1594, %v1593
      %v1670 = vpack.c.bf16 %v1596, %v1595
      %v1671 = vpack.c.bf16 %v1598, %v1597
      %v1672 = vpack.c.bf16 %v1600, %v1599
      %v1673 = vpack.c.bf16 %v1602, %v1601
      %v1674 = vpack.c.bf16 %v1604, %v1603
      %v1675 = vpack.c.bf16 %v1606, %v1605
      %v1676 = vpack.c.bf16 %v1608, %v1607
      %v1677 = vpack.c.bf16 %v1610, %v1609
      %v1678 = vpack.c.bf16 %v1612, %v1611
      %v1679 = vpack.c.bf16 %v1614, %v1613
      %v1680 = vpack.c.bf16 %v1616, %v1615
      %v1681 = vld [vmem:[%s3] sm:$0xf]
      %v1682 = vld [vmem:[%s3 + $0x4] sm:$0xf]
      %v1685 = vunpack.c.l.b16 %v1681
      %v1686 = vunpack.c.l.b16 %v1682
      %v1687 = vpack.c.b16 %v1686, %v1685
      %vm1689 = vcmask 130048
      %v1691 = vsel %vm1689, %v1617, 0
      %v1694 = vsel %vm1689, %v1618, 0
      %v1697 = vsel %vm1689, %v1619, 0
      %v1700 = vsel %vm1689, %v1620, 0
      %v1703 = vsel %vm1689, %v1621, 0
      %v1706 = vsel %vm1689, %v1622, 0
      %v1709 = vsel %vm1689, %v1623, 0
      %v1712 = vsel %vm1689, %v1624, 0
      %v1715 = vsel %vm1689, %v1625, 0
      %v1718 = vsel %vm1689, %v1626, 0
      %v1721 = vsel %vm1689, %v1627, 0
      %v1724 = vsel %vm1689, %v1628, 0
      %v1727 = vsel %vm1689, %v1629, 0
      %v1730 = vsel %vm1689, %v1630, 0
      %v1733 = vsel %vm1689, %v1631, 0
      %v1736 = vsel %vm1689, %v1632, 0
      %v1739 = vsel %vm1689, %v1633, 0
      %v1742 = vsel %vm1689, %v1634, 0
      %v1745 = vsel %vm1689, %v1635, 0
      %v1748 = vsel %vm1689, %v1636, 0
      %v1751 = vsel %vm1689, %v1637, 0
      %v1754 = vsel %vm1689, %v1638, 0
      %v1757 = vsel %vm1689, %v1639, 0
      %v1760 = vsel %vm1689, %v1640, 0
      %v1763 = vsel %vm1689, %v1641, 0
      %v1766 = vsel %vm1689, %v1642, 0
      %v1769 = vsel %vm1689, %v1643, 0
      %v1772 = vsel %vm1689, %v1644, 0
      %v1775 = vsel %vm1689, %v1645, 0
      %v1778 = vsel %vm1689, %v1646, 0
      %v1781 = vsel %vm1689, %v1647, 0
      %v1784 = vsel %vm1689, %v1648, 0
      %v1787 = vsel %vm1689, %v1649, 0
      %v1790 = vsel %vm1689, %v1650, 0
      %v1793 = vsel %vm1689, %v1651, 0
      %v1796 = vsel %vm1689, %v1652, 0
      %v1799 = vsel %vm1689, %v1653, 0
      %v1802 = vsel %vm1689, %v1654, 0
      %v1805 = vsel %vm1689, %v1655, 0
      %v1808 = vsel %vm1689, %v1656, 0
      %v1811 = vsel %vm1689, %v1657, 0
      %v1814 = vsel %vm1689, %v1658, 0
      %v1817 = vsel %vm1689, %v1659, 0
      %v1820 = vsel %vm1689, %v1660, 0
      %v1823 = vsel %vm1689, %v1661, 0
      %v1826 = vsel %vm1689, %v1662, 0
      %v1829 = vsel %vm1689, %v1663, 0
      %v1832 = vsel %vm1689, %v1664, 0
      %v1835 = vsel %vm1689, %v1665, 0
      %v1838 = vsel %vm1689, %v1666, 0
      %v1841 = vsel %vm1689, %v1667, 0
      %v1844 = vsel %vm1689, %v1668, 0
      %v1847 = vsel %vm1689, %v1669, 0
      %v1850 = vsel %vm1689, %v1670, 0
      %v1853 = vsel %vm1689, %v1671, 0
      %v1856 = vsel %vm1689, %v1672, 0
      %v1859 = vsel %vm1689, %v1673, 0
      %v1862 = vsel %vm1689, %v1674, 0
      %v1865 = vsel %vm1689, %v1675, 0
      %v1868 = vsel %vm1689, %v1676, 0
      %v1871 = vsel %vm1689, %v1677, 0
      %v1874 = vsel %vm1689, %v1678, 0
      %v1877 = vsel %vm1689, %v1679, 0
      %v1880 = vsel %vm1689, %v1680, 0
      %1882 = vmatprep.subr.bf16.mxu0 0
      %1883 = vmatpush1.bf16.msra.mxu0 %v1687
      %1884 = vmatprep.subr.bf16.mxu0 0
      %1885 = vmatpush1.bf16.msra.mxu0 0
      %1886 = vmatprep.subr.bf16.mxu0 0
      %1887 = vmatpush1.bf16.msra.mxu0 0
      %1888 = vmatprep.subr.bf16.mxu0 0
      %1889 = vmatpush1.bf16.msra.mxu0 0
      %1890 = vmatprep.subr.bf16.mxu0 0
      %1891 = vmatpush1.bf16.msra.mxu0 0
      %1892 = vmatprep.subr.bf16.mxu0 0
      %1893 = vmatpush1.bf16.msra.mxu0 0
      %1894 = vmatprep.subr.bf16.mxu0 0
      %1895 = vmatpush1.bf16.msra.mxu0 0
      %1896 = vmatprep.subr.bf16.mxu0 0
      %1897 = vmatpush1.bf16.msra.mxu0 0
      %1898 = vmatprep.subr.bf16.mxu0 0
      %1899 = vmatpush1.bf16.msra.mxu0 0
      %1900 = vmatprep.subr.bf16.mxu0 0
      %1901 = vmatpush1.bf16.msra.mxu0 0
      %1902 = vmatprep.subr.bf16.mxu0 0
      %1903 = vmatpush1.bf16.msra.mxu0 0
      %1904 = vmatprep.subr.bf16.mxu0 0
      %1905 = vmatpush1.bf16.msra.mxu0 0
      %1906 = vmatprep.subr.bf16.mxu0 0
      %1907 = vmatpush1.bf16.msra.mxu0 0
      %1908 = vmatprep.subr.bf16.mxu0 0
      %1909 = vmatpush1.bf16.msra.mxu0 0
      %1910 = vmatprep.subr.bf16.mxu0 0
      %1911 = vmatpush1.bf16.msra.mxu0 0
      %1912 = vmatprep.subr.bf16.mxu0 0
      %1913 = vmatpush1.bf16.msra.mxu0 0
      %1914 = vmatprep.mubr.bf16.mxu0 0
      %1915 = vmatmul.mubr.bf16.gmra.mrb[0].mxu0 %v1691
      %v1916 = vpop.f32.mrb[0].mxu0
      %v1917 = vadd.f32 0.0, %v1916
      %v1918 = vpop.f32.mrb[0].mxu0
      %v1919 = vpop.f32.mrb[0].mxu0
      %v1920 = vadd.f32 0.0, %v1919
      %v1921 = vpop.f32.mrb[0].mxu0
      %1922 = vmatprep.mubr.bf16.mxu0 0
      %1923 = vmatmul.mubr.bf16.gmra.mrb[0].mxu0 %v1694
      %v1924 = vpop.f32.mrb[0].mxu0
      %v1925 = vadd.f32 0.0, %v1924
      %v1926 = vpop.f32.mrb[0].mxu0
      %v1927 = vpop.f32.mrb[0].mxu0
      %v1928 = vadd.f32 0.0, %v1927
      %v1929 = vpop.f32.mrb[0].mxu0
      %1930 = vmatprep.mubr.bf16.mxu0 0
      %1931 = vmatmul.mubr.bf16.gmra.mrb[0].mxu0 %v1697
      %v1932 = vpop.f32.mrb[0].mxu0
      %v1933 = vadd.f32 0.0, %v1932
      %v1934 = vpop.f32.mrb[0].mxu0
      %v1935 = vpop.f32.mrb[0].mxu0
      %v1936 = vadd.f32 0.0, %v1935
      %v1937 = vpop.f32.mrb[0].mxu0
      %1938 = vmatprep.mubr.bf16.mxu0 0
      %1939 = vmatmul.mubr.bf16.gmra.mrb[0].mxu0 %v1700
      %v1940 = vpop.f32.mrb[0].mxu0
      %v1941 = vadd.f32 0.0, %v1940
      %v1942 = vpop.f32.mrb[0].mxu0
      %v1943 = vpop.f32.mrb[0].mxu0
      %v1944 = vadd.f32 0.0, %v1943
      %v1945 = vpop.f32.mrb[0].mxu0
      %1946 = vmatprep.mubr.bf16.mxu0 0
      %1947 = vmatmul.mubr.bf16.gmra.mrb[0].mxu0 %v1703
      %v1948 = vpop.f32.mrb[0].mxu0
      %v1949 = vadd.f32 0.0, %v1948
      %v1950 = vpop.f32.mrb[0].mxu0
      %v1951 = vpop.f32.mrb[0].mxu0
      %v1952 = vadd.f32 0.0, %v1951
      %v1953 = vpop.f32.mrb[0].mxu0
      %1954 = vmatprep.mubr.bf16.mxu0 0
      %1955 = vmatmul.mubr.bf16.gmra.mrb[0].mxu0 %v1706
      %v1956 = vpop.f32.mrb[0].mxu0
      %v1957 = vadd.f32 0.0, %v1956
      %v1958 = vpop.f32.mrb[0].mxu0
      %v1959 = vpop.f32.mrb[0].mxu0
      %v1960 = vadd.f32 0.0, %v1959
      %v1961 = vpop.f32.mrb[0].mxu0
      %1962 = vmatprep.mubr.bf16.mxu0 0
      %1963 = vmatmul.mubr.bf16.gmra.mrb[0].mxu0 %v1709
      %v1964 = vpop.f32.mrb[0].mxu0
      %v1965 = vadd.f32 0.0, %v1964
      %v1966 = vpop.f32.mrb[0].mxu0
      %v1967 = vpop.f32.mrb[0].mxu0
      %v1968 = vadd.f32 0.0, %v1967
      %v1969 = vpop.f32.mrb[0].mxu0
      %1970 = vmatprep.mubr.bf16.mxu0 0
      %1971 = vmatmul.mubr.bf16.gmra.mrb[0].mxu0 %v1712
      %v1972 = vpop.f32.mrb[0].mxu0
      %v1973 = vadd.f32 0.0, %v1972
      %v1974 = vpop.f32.mrb[0].mxu0
      %v1975 = vpop.f32.mrb[0].mxu0
      %v1976 = vadd.f32 0.0, %v1975
      %v1977 = vpop.f32.mrb[0].mxu0
      %1978 = vmatprep.mubr.bf16.mxu0 0
      %1979 = vmatmul.mubr.bf16.gmra.mrb[0].mxu0 %v1715
      %v1980 = vpop.f32.mrb[0].mxu0
      %v1981 = vadd.f32 0.0, %v1980
      %v1982 = vpop.f32.mrb[0].mxu0
      %v1983 = vpop.f32.mrb[0].mxu0
      %v1984 = vadd.f32 0.0, %v1983
      %v1985 = vpop.f32.mrb[0].mxu0
      %1986 = vmatprep.mubr.bf16.mxu0 0
      %1987 = vmatmul.mubr.bf16.gmra.mrb[0].mxu0 %v1718
      %v1988 = vpop.f32.mrb[0].mxu0
      %v1989 = vadd.f32 0.0, %v1988
      %v1990 = vpop.f32.mrb[0].mxu0
      %v1991 = vpop.f32.mrb[0].mxu0
      %v1992 = vadd.f32 0.0, %v1991
      %v1993 = vpop.f32.mrb[0].mxu0
      %1994 = vmatprep.mubr.bf16.mxu0 0
      %1995 = vmatmul.mubr.bf16.gmra.mrb[0].mxu0 %v1721
      %v1996 = vpop.f32.mrb[0].mxu0
      %v1997 = vadd.f32 0.0, %v1996
      %v1998 = vpop.f32.mrb[0].mxu0
      %v1999 = vpop.f32.mrb[0].mxu0
      %v2000 = vadd.f32 0.0, %v1999
      %v2001 = vpop.f32.mrb[0].mxu0
      %2002 = vmatprep.mubr.bf16.mxu0 0
      %2003 = vmatmul.mubr.bf16.gmra.mrb[0].mxu0 %v1724
      %v2004 = vpop.f32.mrb[0].mxu0
      %v2005 = vadd.f32 0.0, %v2004
      %v2006 = vpop.f32.mrb[0].mxu0
      %v2007 = vpop.f32.mrb[0].mxu0
      %v2008 = vadd.f32 0.0, %v2007
      %v2009 = vpop.f32.mrb[0].mxu0
      %2010 = vmatprep.mubr.bf16.mxu0 0
      %2011 = vmatmul.mubr.bf16.gmra.mrb[0].mxu0 %v1727
      %v2012 = vpop.f32.mrb[0].mxu0
      %v2013 = vadd.f32 0.0, %v2012
      %v2014 = vpop.f32.mrb[0].mxu0
      %v2015 = vpop.f32.mrb[0].mxu0
      %v2016 = vadd.f32 0.0, %v2015
      %v2017 = vpop.f32.mrb[0].mxu0
      %2018 = vmatprep.mubr.bf16.mxu0 0
      %2019 = vmatmul.mubr.bf16.gmra.mrb[0].mxu0 %v1730
      %v2020 = vpop.f32.mrb[0].mxu0
      %v2021 = vadd.f32 0.0, %v2020
      %v2022 = vpop.f32.mrb[0].mxu0
      %v2023 = vpop.f32.mrb[0].mxu0
      %v2024 = vadd.f32 0.0, %v2023
      %v2025 = vpop.f32.mrb[0].mxu0
      %2026 = vmatprep.mubr.bf16.mxu0 0
      %2027 = vmatmul.mubr.bf16.gmra.mrb[0].mxu0 %v1733
      %v2028 = vpop.f32.mrb[0].mxu0
      %v2029 = vadd.f32 0.0, %v2028
      %v2030 = vpop.f32.mrb[0].mxu0
      %v2031 = vpop.f32.mrb[0].mxu0
      %v2032 = vadd.f32 0.0, %v2031
      %v2033 = vpop.f32.mrb[0].mxu0
      %2034 = vmatprep.mubr.bf16.mxu0 0
      %2035 = vmatmul.mubr.bf16.gmra.mrb[0].mxu0 %v1736
      %v2036 = vpop.f32.mrb[0].mxu0
      %v2037 = vadd.f32 0.0, %v2036
      %v2038 = vpop.f32.mrb[0].mxu0
      %v2039 = vpop.f32.mrb[0].mxu0
      %v2040 = vadd.f32 0.0, %v2039
      %v2041 = vpop.f32.mrb[0].mxu0
      %2042 = vmatprep.mubr.bf16.mxu0 0
      %2043 = vmatmul.mubr.bf16.gmra.mrb[0].mxu0 %v1739
      %v2044 = vpop.f32.mrb[0].mxu0
      %v2045 = vadd.f32 0.0, %v2044
      %v2046 = vpop.f32.mrb[0].mxu0
      %v2047 = vpop.f32.mrb[0].mxu0
      %v2048 = vadd.f32 0.0, %v2047
      %v2049 = vpop.f32.mrb[0].mxu0
      %2050 = vmatprep.mubr.bf16.mxu0 0
      %2051 = vmatmul.mubr.bf16.gmra.mrb[0].mxu0 %v1742
      %v2052 = vpop.f32.mrb[0].mxu0
      %v2053 = vadd.f32 0.0, %v2052
      %v2054 = vpop.f32.mrb[0].mxu0
      %v2055 = vpop.f32.mrb[0].mxu0
      %v2056 = vadd.f32 0.0, %v2055
      %v2057 = vpop.f32.mrb[0].mxu0
      %2058 = vmatprep.mubr.bf16.mxu0 0
      %2059 = vmatmul.mubr.bf16.gmra.mrb[0].mxu0 %v1745
      %v2060 = vpop.f32.mrb[0].mxu0
      %v2061 = vadd.f32 0.0, %v2060
      %v2062 = vpop.f32.mrb[0].mxu0
      %v2063 = vpop.f32.mrb[0].mxu0
      %v2064 = vadd.f32 0.0, %v2063
      %v2065 = vpop.f32.mrb[0].mxu0
      %2066 = vmatprep.mubr.bf16.mxu0 0
      %2067 = vmatmul.mubr.bf16.gmra.mrb[0].mxu0 %v1748
      %v2068 = vpop.f32.mrb[0].mxu0
      %v2069 = vadd.f32 0.0, %v2068
      %v2070 = vpop.f32.mrb[0].mxu0
      %v2071 = vpop.f32.mrb[0].mxu0
      %v2072 = vadd.f32 0.0, %v2071
      %v2073 = vpop.f32.mrb[0].mxu0
      %2074 = vmatprep.mubr.bf16.mxu0 0
      %2075 = vmatmul.mubr.bf16.gmra.mrb[0].mxu0 %v1751
      %v2076 = vpop.f32.mrb[0].mxu0
      %v2077 = vadd.f32 0.0, %v2076
      %v2078 = vpop.f32.mrb[0].mxu0
      %v2079 = vpop.f32.mrb[0].mxu0
      %v2080 = vadd.f32 0.0, %v2079
      %v2081 = vpop.f32.mrb[0].mxu0
      %2082 = vmatprep.mubr.bf16.mxu0 0
      %2083 = vmatmul.mubr.bf16.gmra.mrb[0].mxu0 %v1754
      %v2084 = vpop.f32.mrb[0].mxu0
      %v2085 = vadd.f32 0.0, %v2084
      %v2086 = vpop.f32.mrb[0].mxu0
      %v2087 = vpop.f32.mrb[0].mxu0
      %v2088 = vadd.f32 0.0, %v2087
      %v2089 = vpop.f32.mrb[0].mxu0
      %2090 = vmatprep.mubr.bf16.mxu0 0
      %2091 = vmatmul.mubr.bf16.gmra.mrb[0].mxu0 %v1757
      %v2092 = vpop.f32.mrb[0].mxu0
      %v2093 = vadd.f32 0.0, %v2092
      %v2094 = vpop.f32.mrb[0].mxu0
      %v2095 = vpop.f32.mrb[0].mxu0
      %v2096 = vadd.f32 0.0, %v2095
      %v2097 = vpop.f32.mrb[0].mxu0
      %2098 = vmatprep.mubr.bf16.mxu0 0
      %2099 = vmatmul.mubr.bf16.gmra.mrb[0].mxu0 %v1760
      %v2100 = vpop.f32.mrb[0].mxu0
      %v2101 = vadd.f32 0.0, %v2100
      %v2102 = vpop.f32.mrb[0].mxu0
      %v2103 = vpop.f32.mrb[0].mxu0
      %v2104 = vadd.f32 0.0, %v2103
      %v2105 = vpop.f32.mrb[0].mxu0
      %2106 = vmatprep.mubr.bf16.mxu0 0
      %2107 = vmatmul.mubr.bf16.gmra.mrb[0].mxu0 %v1763
      %v2108 = vpop.f32.mrb[0].mxu0
      %v2109 = vadd.f32 0.0, %v2108
      %v2110 = vpop.f32.mrb[0].mxu0
      %v2111 = vpop.f32.mrb[0].mxu0
      %v2112 = vadd.f32 0.0, %v2111
      %v2113 = vpop.f32.mrb[0].mxu0
      %2114 = vmatprep.mubr.bf16.mxu0 0
      %2115 = vmatmul.mubr.bf16.gmra.mrb[0].mxu0 %v1766
      %v2116 = vpop.f32.mrb[0].mxu0
      %v2117 = vadd.f32 0.0, %v2116
      %v2118 = vpop.f32.mrb[0].mxu0
      %v2119 = vpop.f32.mrb[0].mxu0
      %v2120 = vadd.f32 0.0, %v2119
      %v2121 = vpop.f32.mrb[0].mxu0
      %2122 = vmatprep.mubr.bf16.mxu0 0
      %2123 = vmatmul.mubr.bf16.gmra.mrb[0].mxu0 %v1769
      %v2124 = vpop.f32.mrb[0].mxu0
      %v2125 = vadd.f32 0.0, %v2124
      %v2126 = vpop.f32.mrb[0].mxu0
      %v2127 = vpop.f32.mrb[0].mxu0
      %v2128 = vadd.f32 0.0, %v2127
      %v2129 = vpop.f32.mrb[0].mxu0
      %2130 = vmatprep.mubr.bf16.mxu0 0
      %2131 = vmatmul.mubr.bf16.gmra.mrb[0].mxu0 %v1772
      %v2132 = vpop.f32.mrb[0].mxu0
      %v2133 = vadd.f32 0.0, %v2132
      %v2134 = vpop.f32.mrb[0].mxu0
      %v2135 = vpop.f32.mrb[0].mxu0
      %v2136 = vadd.f32 0.0, %v2135
      %v2137 = vpop.f32.mrb[0].mxu0
      %2138 = vmatprep.mubr.bf16.mxu0 0
      %2139 = vmatmul.mubr.bf16.gmra.mrb[0].mxu0 %v1775
      %v2140 = vpop.f32.mrb[0].mxu0
      %v2141 = vadd.f32 0.0, %v2140
      %v2142 = vpop.f32.mrb[0].mxu0
      %v2143 = vpop.f32.mrb[0].mxu0
      %v2144 = vadd.f32 0.0, %v2143
      %v2145 = vpop.f32.mrb[0].mxu0
      %2146 = vmatprep.mubr.bf16.mxu0 0
      %2147 = vmatmul.mubr.bf16.gmra.mrb[0].mxu0 %v1778
      %v2148 = vpop.f32.mrb[0].mxu0
      %v2149 = vadd.f32 0.0, %v2148
      %v2150 = vpop.f32.mrb[0].mxu0
      %v2151 = vpop.f32.mrb[0].mxu0
      %v2152 = vadd.f32 0.0, %v2151
      %v2153 = vpop.f32.mrb[0].mxu0
      %2154 = vmatprep.mubr.bf16.mxu0 0
      %2155 = vmatmul.mubr.bf16.gmra.mrb[0].mxu0 %v1781
      %v2156 = vpop.f32.mrb[0].mxu0
      %v2157 = vadd.f32 0.0, %v2156
      %v2158 = vpop.f32.mrb[0].mxu0
      %v2159 = vpop.f32.mrb[0].mxu0
      %v2160 = vadd.f32 0.0, %v2159
      %v2161 = vpop.f32.mrb[0].mxu0
      %2162 = vmatprep.mubr.bf16.mxu0 0
      %2163 = vmatmul.mubr.bf16.gmra.mrb[0].mxu0 %v1784
      %v2164 = vpop.f32.mrb[0].mxu0
      %v2165 = vadd.f32 0.0, %v2164
      %v2166 = vpop.f32.mrb[0].mxu0
      %v2167 = vpop.f32.mrb[0].mxu0
      %v2168 = vadd.f32 0.0, %v2167
      %v2169 = vpop.f32.mrb[0].mxu0
      %2170 = vmatprep.mubr.bf16.mxu0 0
      %2171 = vmatmul.mubr.bf16.gmra.mrb[0].mxu0 %v1787
      %v2172 = vpop.f32.mrb[0].mxu0
      %v2173 = vadd.f32 0.0, %v2172
      %v2174 = vpop.f32.mrb[0].mxu0
      %v2175 = vpop.f32.mrb[0].mxu0
      %v2176 = vadd.f32 0.0, %v2175
      %v2177 = vpop.f32.mrb[0].mxu0
      %2178 = vmatprep.mubr.bf16.mxu0 0
      %2179 = vmatmul.mubr.bf16.gmra.mrb[0].mxu0 %v1790
      %v2180 = vpop.f32.mrb[0].mxu0
      %v2181 = vadd.f32 0.0, %v2180
      %v2182 = vpop.f32.mrb[0].mxu0
      %v2183 = vpop.f32.mrb[0].mxu0
      %v2184 = vadd.f32 0.0, %v2183
      %v2185 = vpop.f32.mrb[0].mxu0
      %2186 = vmatprep.mubr.bf16.mxu0 0
      %2187 = vmatmul.mubr.bf16.gmra.mrb[0].mxu0 %v1793
      %v2188 = vpop.f32.mrb[0].mxu0
      %v2189 = vadd.f32 0.0, %v2188
      %v2190 = vpop.f32.mrb[0].mxu0
      %v2191 = vpop.f32.mrb[0].mxu0
      %v2192 = vadd.f32 0.0, %v2191
      %v2193 = vpop.f32.mrb[0].mxu0
      %2194 = vmatprep.mubr.bf16.mxu0 0
      %2195 = vmatmul.mubr.bf16.gmra.mrb[0].mxu0 %v1796
      %v2196 = vpop.f32.mrb[0].mxu0
      %v2197 = vadd.f32 0.0, %v2196
      %v2198 = vpop.f32.mrb[0].mxu0
      %v2199 = vpop.f32.mrb[0].mxu0
      %v2200 = vadd.f32 0.0, %v2199
      %v2201 = vpop.f32.mrb[0].mxu0
      %2202 = vmatprep.mubr.bf16.mxu0 0
      %2203 = vmatmul.mubr.bf16.gmra.mrb[0].mxu0 %v1799
      %v2204 = vpop.f32.mrb[0].mxu0
      %v2205 = vadd.f32 0.0, %v2204
      %v2206 = vpop.f32.mrb[0].mxu0
      %v2207 = vpop.f32.mrb[0].mxu0
      %v2208 = vadd.f32 0.0, %v2207
      %v2209 = vpop.f32.mrb[0].mxu0
      %2210 = vmatprep.mubr.bf16.mxu0 0
      %2211 = vmatmul.mubr.bf16.gmra.mrb[0].mxu0 %v1802
      %v2212 = vpop.f32.mrb[0].mxu0
      %v2213 = vadd.f32 0.0, %v2212
      %v2214 = vpop.f32.mrb[0].mxu0
      %v2215 = vpop.f32.mrb[0].mxu0
      %v2216 = vadd.f32 0.0, %v2215
      %v2217 = vpop.f32.mrb[0].mxu0
      %2218 = vmatprep.mubr.bf16.mxu0 0
      %2219 = vmatmul.mubr.bf16.gmra.mrb[0].mxu0 %v1805
      %v2220 = vpop.f32.mrb[0].mxu0
      %v2221 = vadd.f32 0.0, %v2220
      %v2222 = vpop.f32.mrb[0].mxu0
      %v2223 = vpop.f32.mrb[0].mxu0
      %v2224 = vadd.f32 0.0, %v2223
      %v2225 = vpop.f32.mrb[0].mxu0
      %2226 = vmatprep.mubr.bf16.mxu0 0
      %2227 = vmatmul.mubr.bf16.gmra.mrb[0].mxu0 %v1808
      %v2228 = vpop.f32.mrb[0].mxu0
      %v2229 = vadd.f32 0.0, %v2228
      %v2230 = vpop.f32.mrb[0].mxu0
      %v2231 = vpop.f32.mrb[0].mxu0
      %v2232 = vadd.f32 0.0, %v2231
      %v2233 = vpop.f32.mrb[0].mxu0
      %2234 = vmatprep.mubr.bf16.mxu0 0
      %2235 = vmatmul.mubr.bf16.gmra.mrb[0].mxu0 %v1811
      %v2236 = vpop.f32.mrb[0].mxu0
      %v2237 = vadd.f32 0.0, %v2236
      %v2238 = vpop.f32.mrb[0].mxu0
      %v2239 = vpop.f32.mrb[0].mxu0
      %v2240 = vadd.f32 0.0, %v2239
      %v2241 = vpop.f32.mrb[0].mxu0
      %2242 = vmatprep.mubr.bf16.mxu0 0
      %2243 = vmatmul.mubr.bf16.gmra.mrb[0].mxu0 %v1814
      %v2244 = vpop.f32.mrb[0].mxu0
      %v2245 = vadd.f32 0.0, %v2244
      %v2246 = vpop.f32.mrb[0].mxu0
      %v2247 = vpop.f32.mrb[0].mxu0
      %v2248 = vadd.f32 0.0, %v2247
      %v2249 = vpop.f32.mrb[0].mxu0
      %2250 = vmatprep.mubr.bf16.mxu0 0
      %2251 = vmatmul.mubr.bf16.gmra.mrb[0].mxu0 %v1817
      %v2252 = vpop.f32.mrb[0].mxu0
      %v2253 = vadd.f32 0.0, %v2252
      %v2254 = vpop.f32.mrb[0].mxu0
      %v2255 = vpop.f32.mrb[0].mxu0
      %v2256 = vadd.f32 0.0, %v2255
      %v2257 = vpop.f32.mrb[0].mxu0
      %2258 = vmatprep.mubr.bf16.mxu0 0
      %2259 = vmatmul.mubr.bf16.gmra.mrb[0].mxu0 %v1820
      %v2260 = vpop.f32.mrb[0].mxu0
      %v2261 = vadd.f32 0.0, %v2260
      %v2262 = vpop.f32.mrb[0].mxu0
      %v2263 = vpop.f32.mrb[0].mxu0
      %v2264 = vadd.f32 0.0, %v2263
      %v2265 = vpop.f32.mrb[0].mxu0
      %2266 = vmatprep.mubr.bf16.mxu0 0
      %2267 = vmatmul.mubr.bf16.gmra.mrb[0].mxu0 %v1823
      %v2268 = vpop.f32.mrb[0].mxu0
      %v2269 = vadd.f32 0.0, %v2268
      %v2270 = vpop.f32.mrb[0].mxu0
      %v2271 = vpop.f32.mrb[0].mxu0
      %v2272 = vadd.f32 0.0, %v2271
      %v2273 = vpop.f32.mrb[0].mxu0
      %2274 = vmatprep.mubr.bf16.mxu0 0
      %2275 = vmatmul.mubr.bf16.gmra.mrb[0].mxu0 %v1826
      %v2276 = vpop.f32.mrb[0].mxu0
      %v2277 = vadd.f32 0.0, %v2276
      %v2278 = vpop.f32.mrb[0].mxu0
      %v2279 = vpop.f32.mrb[0].mxu0
      %v2280 = vadd.f32 0.0, %v2279
      %v2281 = vpop.f32.mrb[0].mxu0
      %2282 = vmatprep.mubr.bf16.mxu0 0
      %2283 = vmatmul.mubr.bf16.gmra.mrb[0].mxu0 %v1829
      %v2284 = vpop.f32.mrb[0].mxu0
      %v2285 = vadd.f32 0.0, %v2284
      %v2286 = vpop.f32.mrb[0].mxu0
      %v2287 = vpop.f32.mrb[0].mxu0
      %v2288 = vadd.f32 0.0, %v2287
      %v2289 = vpop.f32.mrb[0].mxu0
      %2290 = vmatprep.mubr.bf16.mxu0 0
      %2291 = vmatmul.mubr.bf16.gmra.mrb[0].mxu0 %v1832
      %v2292 = vpop.f32.mrb[0].mxu0
      %v2293 = vadd.f32 0.0, %v2292
      %v2294 = vpop.f32.mrb[0].mxu0
      %v2295 = vpop.f32.mrb[0].mxu0
      %v2296 = vadd.f32 0.0, %v2295
      %v2297 = vpop.f32.mrb[0].mxu0
      %2298 = vmatprep.mubr.bf16.mxu0 0
      %2299 = vmatmul.mubr.bf16.gmra.mrb[0].mxu0 %v1835
      %v2300 = vpop.f32.mrb[0].mxu0
      %v2301 = vadd.f32 0.0, %v2300
      %v2302 = vpop.f32.mrb[0].mxu0
      %v2303 = vpop.f32.mrb[0].mxu0
      %v2304 = vadd.f32 0.0, %v2303
      %v2305 = vpop.f32.mrb[0].mxu0
      %2306 = vmatprep.mubr.bf16.mxu0 0
      %2307 = vmatmul.mubr.bf16.gmra.mrb[0].mxu0 %v1838
      %v2308 = vpop.f32.mrb[0].mxu0
      %v2309 = vadd.f32 0.0, %v2308
      %v2310 = vpop.f32.mrb[0].mxu0
      %v2311 = vpop.f32.mrb[0].mxu0
      %v2312 = vadd.f32 0.0, %v2311
      %v2313 = vpop.f32.mrb[0].mxu0
      %2314 = vmatprep.mubr.bf16.mxu0 0
      %2315 = vmatmul.mubr.bf16.gmra.mrb[0].mxu0 %v1841
      %v2316 = vpop.f32.mrb[0].mxu0
      %v2317 = vadd.f32 0.0, %v2316
      %v2318 = vpop.f32.mrb[0].mxu0
      %v2319 = vpop.f32.mrb[0].mxu0
      %v2320 = vadd.f32 0.0, %v2319
      %v2321 = vpop.f32.mrb[0].mxu0
      %2322 = vmatprep.mubr.bf16.mxu0 0
      %2323 = vmatmul.mubr.bf16.gmra.mrb[0].mxu0 %v1844
      %v2324 = vpop.f32.mrb[0].mxu0
      %v2325 = vadd.f32 0.0, %v2324
      %v2326 = vpop.f32.mrb[0].mxu0
      %v2327 = vpop.f32.mrb[0].mxu0
      %v2328 = vadd.f32 0.0, %v2327
      %v2329 = vpop.f32.mrb[0].mxu0
      %2330 = vmatprep.mubr.bf16.mxu0 0
      %2331 = vmatmul.mubr.bf16.gmra.mrb[0].mxu0 %v1847
      %v2332 = vpop.f32.mrb[0].mxu0
      %v2333 = vadd.f32 0.0, %v2332
      %v2334 = vpop.f32.mrb[0].mxu0
      %v2335 = vpop.f32.mrb[0].mxu0
      %v2336 = vadd.f32 0.0, %v2335
      %v2337 = vpop.f32.mrb[0].mxu0
      %2338 = vmatprep.mubr.bf16.mxu0 0
      %2339 = vmatmul.mubr.bf16.gmra.mrb[0].mxu0 %v1850
      %v2340 = vpop.f32.mrb[0].mxu0
      %v2341 = vadd.f32 0.0, %v2340
      %v2342 = vpop.f32.mrb[0].mxu0
      %v2343 = vpop.f32.mrb[0].mxu0
      %v2344 = vadd.f32 0.0, %v2343
      %v2345 = vpop.f32.mrb[0].mxu0
      %2346 = vmatprep.mubr.bf16.mxu0 0
      %2347 = vmatmul.mubr.bf16.gmra.mrb[0].mxu0 %v1853
      %v2348 = vpop.f32.mrb[0].mxu0
      %v2349 = vadd.f32 0.0, %v2348
      %v2350 = vpop.f32.mrb[0].mxu0
      %v2351 = vpop.f32.mrb[0].mxu0
      %v2352 = vadd.f32 0.0, %v2351
      %v2353 = vpop.f32.mrb[0].mxu0
      %2354 = vmatprep.mubr.bf16.mxu0 0
      %2355 = vmatmul.mubr.bf16.gmra.mrb[0].mxu0 %v1856
      %v2356 = vpop.f32.mrb[0].mxu0
      %v2357 = vadd.f32 0.0, %v2356
      %v2358 = vpop.f32.mrb[0].mxu0
      %v2359 = vpop.f32.mrb[0].mxu0
      %v2360 = vadd.f32 0.0, %v2359
      %v2361 = vpop.f32.mrb[0].mxu0
      %2362 = vmatprep.mubr.bf16.mxu0 0
      %2363 = vmatmul.mubr.bf16.gmra.mrb[0].mxu0 %v1859
      %v2364 = vpop.f32.mrb[0].mxu0
      %v2365 = vadd.f32 0.0, %v2364
      %v2366 = vpop.f32.mrb[0].mxu0
      %v2367 = vpop.f32.mrb[0].mxu0
      %v2368 = vadd.f32 0.0, %v2367
      %v2369 = vpop.f32.mrb[0].mxu0
      %2370 = vmatprep.mubr.bf16.mxu0 0
      %2371 = vmatmul.mubr.bf16.gmra.mrb[0].mxu0 %v1862
      %v2372 = vpop.f32.mrb[0].mxu0
      %v2373 = vadd.f32 0.0, %v2372
      %v2374 = vpop.f32.mrb[0].mxu0
      %v2375 = vpop.f32.mrb[0].mxu0
      %v2376 = vadd.f32 0.0, %v2375
      %v2377 = vpop.f32.mrb[0].mxu0
      %2378 = vmatprep.mubr.bf16.mxu0 0
      %2379 = vmatmul.mubr.bf16.gmra.mrb[0].mxu0 %v1865
      %v2380 = vpop.f32.mrb[0].mxu0
      %v2381 = vadd.f32 0.0, %v2380
      %v2382 = vpop.f32.mrb[0].mxu0
      %v2383 = vpop.f32.mrb[0].mxu0
      %v2384 = vadd.f32 0.0, %v2383
      %v2385 = vpop.f32.mrb[0].mxu0
      %2386 = vmatprep.mubr.bf16.mxu0 0
      %2387 = vmatmul.mubr.bf16.gmra.mrb[0].mxu0 %v1868
      %v2388 = vpop.f32.mrb[0].mxu0
      %v2389 = vadd.f32 0.0, %v2388
      %v2390 = vpop.f32.mrb[0].mxu0
      %v2391 = vpop.f32.mrb[0].mxu0
      %v2392 = vadd.f32 0.0, %v2391
      %v2393 = vpop.f32.mrb[0].mxu0
      %2394 = vmatprep.mubr.bf16.mxu0 0
      %2395 = vmatmul.mubr.bf16.gmra.mrb[0].mxu0 %v1871
      %v2396 = vpop.f32.mrb[0].mxu0
      %v2397 = vadd.f32 0.0, %v2396
      %v2398 = vpop.f32.mrb[0].mxu0
      %v2399 = vpop.f32.mrb[0].mxu0
      %v2400 = vadd.f32 0.0, %v2399
      %v2401 = vpop.f32.mrb[0].mxu0
      %2402 = vmatprep.mubr.bf16.mxu0 0
      %2403 = vmatmul.mubr.bf16.gmra.mrb[0].mxu0 %v1874
      %v2404 = vpop.f32.mrb[0].mxu0
      %v2405 = vadd.f32 0.0, %v2404
      %v2406 = vpop.f32.mrb[0].mxu0
      %v2407 = vpop.f32.mrb[0].mxu0
      %v2408 = vadd.f32 0.0, %v2407
      %v2409 = vpop.f32.mrb[0].mxu0
      %2410 = vmatprep.mubr.bf16.mxu0 0
      %2411 = vmatmul.mubr.bf16.gmra.mrb[0].mxu0 %v1877
      %v2412 = vpop.f32.mrb[0].mxu0
      %v2413 = vadd.f32 0.0, %v2412
      %v2414 = vpop.f32.mrb[0].mxu0
      %v2415 = vpop.f32.mrb[0].mxu0
      %v2416 = vadd.f32 0.0, %v2415
      %v2417 = vpop.f32.mrb[0].mxu0
      %2418 = vmatprep.mubr.bf16.mxu0 0
      %2419 = vmatmul.mubr.bf16.gmra.mrb[0].mxu0 %v1880
      %v2420 = vpop.f32.mrb[0].mxu0
      %v2421 = vadd.f32 0.0, %v2420
      %v2422 = vpop.f32.mrb[0].mxu0
      %v2423 = vpop.f32.mrb[0].mxu0
      %v2424 = vadd.f32 0.0, %v2423
      %v2425 = vpop.f32.mrb[0].mxu0
      %2426 = vdwg.mxu0
      %v2427 = vmax.f32 %v1917, %v1981
      %v2428 = vmax.f32 %v1920, %v1984
      %v2429 = vmax.f32 %v1925, %v1989
      %v2430 = vmax.f32 %v1928, %v1992
      %v2431 = vmax.f32 %v1933, %v1997
      %v2432 = vmax.f32 %v1936, %v2000
      %v2433 = vmax.f32 %v1941, %v2005
      %v2434 = vmax.f32 %v1944, %v2008
      %v2435 = vmax.f32 %v1949, %v2013
      %v2436 = vmax.f32 %v1952, %v2016
      %v2437 = vmax.f32 %v1957, %v2021
      %v2438 = vmax.f32 %v1960, %v2024
      %v2439 = vmax.f32 %v1965, %v2029
      %v2440 = vmax.f32 %v1968, %v2032
      %v2441 = vmax.f32 %v1973, %v2037
      %v2442 = vmax.f32 %v1976, %v2040
      %v2443 = vmax.f32 %v2427, %v2045
      %v2444 = vmax.f32 %v2428, %v2048
      %v2445 = vmax.f32 %v2429, %v2053
      %v2446 = vmax.f32 %v2430, %v2056
      %v2447 = vmax.f32 %v2431, %v2061
      %v2448 = vmax.f32 %v2432, %v2064
      %v2449 = vmax.f32 %v2433, %v2069
      %v2450 = vmax.f32 %v2434, %v2072
      %v2451 = vmax.f32 %v2435, %v2077
      %v2452 = vmax.f32 %v2436, %v2080
      %v2453 = vmax.f32 %v2437, %v2085
      %v2454 = vmax.f32 %v2438, %v2088
      %v2455 = vmax.f32 %v2439, %v2093
      %v2456 = vmax.f32 %v2440, %v2096
      %v2457 = vmax.f32 %v2441, %v2101
      %v2458 = vmax.f32 %v2442, %v2104
      %v2459 = vmax.f32 %v2443, %v2109
      %v2460 = vmax.f32 %v2444, %v2112
      %v2461 = vmax.f32 %v2445, %v2117
      %v2462 = vmax.f32 %v2446, %v2120
      %v2463 = vmax.f32 %v2447, %v2125
      %v2464 = vmax.f32 %v2448, %v2128
      %v2465 = vmax.f32 %v2449, %v2133
      %v2466 = vmax.f32 %v2450, %v2136
      %v2467 = vmax.f32 %v2451, %v2141
      %v2468 = vmax.f32 %v2452, %v2144
      %v2469 = vmax.f32 %v2453, %v2149
      %v2470 = vmax.f32 %v2454, %v2152
      %v2471 = vmax.f32 %v2455, %v2157
      %v2472 = vmax.f32 %v2456, %v2160
      %v2473 = vmax.f32 %v2457, %v2165
      %v2474 = vmax.f32 %v2458, %v2168
      %v2475 = vmax.f32 %v2459, %v2173
      %v2476 = vmax.f32 %v2460, %v2176
      %v2477 = vmax.f32 %v2461, %v2181
      %v2478 = vmax.f32 %v2462, %v2184
      %v2479 = vmax.f32 %v2463, %v2189
      %v2480 = vmax.f32 %v2464, %v2192
      %v2481 = vmax.f32 %v2465, %v2197
      %v2482 = vmax.f32 %v2466, %v2200
      %v2483 = vmax.f32 %v2467, %v2205
      %v2484 = vmax.f32 %v2468, %v2208
      %v2485 = vmax.f32 %v2469, %v2213
      %v2486 = vmax.f32 %v2470, %v2216
      %v2487 = vmax.f32 %v2471, %v2221
      %v2488 = vmax.f32 %v2472, %v2224
      %v2489 = vmax.f32 %v2473, %v2229
      %v2490 = vmax.f32 %v2474, %v2232
      %v2491 = vmax.f32 %v2475, %v2237
      %v2492 = vmax.f32 %v2476, %v2240
      %v2493 = vmax.f32 %v2477, %v2245
      %v2494 = vmax.f32 %v2478, %v2248
      %v2495 = vmax.f32 %v2479, %v2253
      %v2496 = vmax.f32 %v2480, %v2256
      %v2497 = vmax.f32 %v2481, %v2261
      %v2498 = vmax.f32 %v2482, %v2264
      %v2499 = vmax.f32 %v2483, %v2269
      %v2500 = vmax.f32 %v2484, %v2272
      %v2501 = vmax.f32 %v2485, %v2277
      %v2502 = vmax.f32 %v2486, %v2280
      %v2503 = vmax.f32 %v2487, %v2285
      %v2504 = vmax.f32 %v2488, %v2288
      %v2505 = vmax.f32 %v2489, %v2293
      %v2506 = vmax.f32 %v2490, %v2296
      %v2507 = vmax.f32 %v2491, %v2301
      %v2508 = vmax.f32 %v2492, %v2304
      %v2509 = vmax.f32 %v2493, %v2309
      %v2510 = vmax.f32 %v2494, %v2312
      %v2511 = vmax.f32 %v2495, %v2317
      %v2512 = vmax.f32 %v2496, %v2320
      %v2513 = vmax.f32 %v2497, %v2325
      %v2514 = vmax.f32 %v2498, %v2328
      %v2515 = vmax.f32 %v2499, %v2333
      %v2516 = vmax.f32 %v2500, %v2336
      %v2517 = vmax.f32 %v2501, %v2341
      %v2518 = vmax.f32 %v2502, %v2344
      %v2519 = vmax.f32 %v2503, %v2349
      %v2520 = vmax.f32 %v2504, %v2352
      %v2521 = vmax.f32 %v2505, %v2357
      %v2522 = vmax.f32 %v2506, %v2360
      %v2523 = vmax.f32 %v2507, %v2365
      %v2524 = vmax.f32 %v2508, %v2368
      %v2525 = vmax.f32 %v2509, %v2373
      %v2526 = vmax.f32 %v2510, %v2376
      %v2527 = vmax.f32 %v2511, %v2381
      %v2528 = vmax.f32 %v2512, %v2384
      %v2529 = vmax.f32 %v2513, %v2389
      %v2530 = vmax.f32 %v2514, %v2392
      %v2531 = vmax.f32 %v2515, %v2397
      %v2532 = vmax.f32 %v2516, %v2400
      %v2533 = vmax.f32 %v2517, %v2405
      %v2534 = vmax.f32 %v2518, %v2408
      %v2535 = vmax.f32 %v2519, %v2413
      %v2536 = vmax.f32 %v2520, %v2416
      %v2537 = vmax.f32 %v2521, %v2421
      %v2538 = vmax.f32 %v2522, %v2424
      %p2539 = scmp.eq.s32.totalorder %s23, 0
      // Predicated region
      $region41: #{_lambda_.1} parent=39 // pred_check
        %p2540 = pneg %p2539
      $region42: #{_lambda_.1} parent=39 // pred_check_branch
        %2542 = sbr.rel (%p2540) target = $region44
      $region43: #{_lambda_.1} parent=39 // pred_region
        %vm2543 = vcmask 261120
        %2544 = vst.msk [vmem:[#allocation2] sm:$0xff] %vm2543, -inf
        %2545 = vst.msk [vmem:[#allocation2 + $0x8] sm:$0xff] %vm2543, -inf
        %2546 = vst.msk [vmem:[#allocation2 + $0x10] sm:$0xff] %vm2543, -inf
        %2547 = vst.msk [vmem:[#allocation2 + $0x18] sm:$0xff] %vm2543, -inf
        %2548 = vst.msk [vmem:[#allocation2 + $0x20] sm:$0xff] %vm2543, -inf
        %2549 = vst.msk [vmem:[#allocation2 + $0x28] sm:$0xff] %vm2543, -inf
        %2550 = vst.msk [vmem:[#allocation2 + $0x30] sm:$0xff] %vm2543, -inf
        %2551 = vst.msk [vmem:[#allocation2 + $0x38] sm:$0xff] %vm2543, -inf
        %2552 = vst.msk [vmem:[#allocation2 + $0x40] sm:$0xff] %vm2543, -inf
        %2553 = vst.msk [vmem:[#allocation2 + $0x48] sm:$0xff] %vm2543, -inf
        %2554 = vst.msk [vmem:[#allocation2 + $0x50] sm:$0xff] %vm2543, -inf
        %2555 = vst.msk [vmem:[#allocation2 + $0x58] sm:$0xff] %vm2543, -inf
        %2556 = vst.msk [vmem:[#allocation2 + $0x60] sm:$0xff] %vm2543, -inf
        %2557 = vst.msk [vmem:[#allocation2 + $0x68] sm:$0xff] %vm2543, -inf
        %2558 = vst.msk [vmem:[#allocation2 + $0x70] sm:$0xff] %vm2543, -inf
        %2559 = vst.msk [vmem:[#allocation2 + $0x78] sm:$0xff] %vm2543, -inf
      $region44: #{_lambda_.1} parent=39 // pred_fallthru
        _
      %v2560 = vld [vmem:[#allocation2] sm:$0xff]
      %v2561 = vld [vmem:[#allocation2 + $0x8] sm:$0xff]
      %v2562 = vld [vmem:[#allocation2 + $0x10] sm:$0xff]
      %v2563 = vld [vmem:[#allocation2 + $0x18] sm:$0xff]
      %v2564 = vld [vmem:[#allocation2 + $0x20] sm:$0xff]
      %v2565 = vld [vmem:[#allocation2 + $0x28] sm:$0xff]
      %v2566 = vld [vmem:[#allocation2 + $0x30] sm:$0xff]
      %v2567 = vld [vmem:[#allocation2 + $0x38] sm:$0xff]
      %v2568 = vld [vmem:[#allocation2 + $0x40] sm:$0xff]
      %v2569 = vld [vmem:[#allocation2 + $0x48] sm:$0xff]
      %v2570 = vld [vmem:[#allocation2 + $0x50] sm:$0xff]
      %v2571 = vld [vmem:[#allocation2 + $0x58] sm:$0xff]
      %v2572 = vld [vmem:[#allocation2 + $0x60] sm:$0xff]
      %v2573 = vld [vmem:[#allocation2 + $0x68] sm:$0xff]
      %v2574 = vld [vmem:[#allocation2 + $0x70] sm:$0xff]
      %v2575 = vld [vmem:[#allocation2 + $0x78] sm:$0xff]
      %v2576 = vmax.f32 %v2560, %v2523
      %v2577 = vmax.f32 %v2561, %v2524
      %v2578 = vmax.f32 %v2562, %v2525
      %v2579 = vmax.f32 %v2563, %v2526
      %v2580 = vmax.f32 %v2564, %v2527
      %v2581 = vmax.f32 %v2565, %v2528
      %v2582 = vmax.f32 %v2566, %v2529
      %v2583 = vmax.f32 %v2567, %v2530
      %v2584 = vmax.f32 %v2568, %v2531
      %v2585 = vmax.f32 %v2569, %v2532
      %v2586 = vmax.f32 %v2570, %v2533
      %v2587 = vmax.f32 %v2571, %v2534
      %v2588 = vmax.f32 %v2572, %v2535
      %v2589 = vmax.f32 %v2573, %v2536
      %v2590 = vmax.f32 %v2574, %v2537
      %v2591 = vmax.f32 %v2575, %v2538
      %vm2592 = vcmask 261120
      %2593 = vst.msk [vmem:[#allocation2] sm:$0xff] %vm2592, %v2576
      %2594 = vst.msk [vmem:[#allocation2 + $0x8] sm:$0xff] %vm2592, %v2577
      %2595 = vst.msk [vmem:[#allocation2 + $0x10] sm:$0xff] %vm2592, %v2578
      %2596 = vst.msk [vmem:[#allocation2 + $0x18] sm:$0xff] %vm2592, %v2579
      %2597 = vst.msk [vmem:[#allocation2 + $0x20] sm:$0xff] %vm2592, %v2580
      %2598 = vst.msk [vmem:[#allocation2 + $0x28] sm:$0xff] %vm2592, %v2581
      %2599 = vst.msk [vmem:[#allocation2 + $0x30] sm:$0xff] %vm2592, %v2582
      %2600 = vst.msk [vmem:[#allocation2 + $0x38] sm:$0xff] %vm2592, %v2583
      %2601 = vst.msk [vmem:[#allocation2 + $0x40] sm:$0xff] %vm2592, %v2584
      %2602 = vst.msk [vmem:[#allocation2 + $0x48] sm:$0xff] %vm2592, %v2585
      %2603 = vst.msk [vmem:[#allocation2 + $0x50] sm:$0xff] %vm2592, %v2586
      %2604 = vst.msk [vmem:[#allocation2 + $0x58] sm:$0xff] %vm2592, %v2587
      %2605 = vst.msk [vmem:[#allocation2 + $0x60] sm:$0xff] %vm2592, %v2588
      %2606 = vst.msk [vmem:[#allocation2 + $0x68] sm:$0xff] %vm2592, %v2589
      %2607 = vst.msk [vmem:[#allocation2 + $0x70] sm:$0xff] %vm2592, %v2590
      %2608 = vst.msk [vmem:[#allocation2 + $0x78] sm:$0xff] %vm2592, %v2591
      // Predicated region
      $region45: #{_lambda_.1} parent=39 // pred_check
        %p2609 = pneg %p2539
      $region46: #{_lambda_.1} parent=39 // pred_check_branch
        %2611 = sbr.rel (%p2609) target = $region48
      $region47: #{_lambda_.1} parent=39 // pred_region
        %v2612 = vld [vmem:[#allocation2] sm:$0xff]
        %v2613 = vld [vmem:[#allocation2 + $0x8] sm:$0xff]
        %v2614 = vld [vmem:[#allocation2 + $0x10] sm:$0xff]
        %v2615 = vld [vmem:[#allocation2 + $0x18] sm:$0xff]
        %v2616 = vld [vmem:[#allocation2 + $0x20] sm:$0xff]
        %v2617 = vld [vmem:[#allocation2 + $0x28] sm:$0xff]
        %v2618 = vld [vmem:[#allocation2 + $0x30] sm:$0xff]
        %v2619 = vld [vmem:[#allocation2 + $0x38] sm:$0xff]
        %v2620 = vld [vmem:[#allocation2 + $0x40] sm:$0xff]
        %v2621 = vld [vmem:[#allocation2 + $0x48] sm:$0xff]
        %v2622 = vld [vmem:[#allocation2 + $0x50] sm:$0xff]
        %v2623 = vld [vmem:[#allocation2 + $0x58] sm:$0xff]
        %v2624 = vld [vmem:[#allocation2 + $0x60] sm:$0xff]
        %v2625 = vld [vmem:[#allocation2 + $0x68] sm:$0xff]
        %v2626 = vld [vmem:[#allocation2 + $0x70] sm:$0xff]
        %v2627 = vld [vmem:[#allocation2 + $0x78] sm:$0xff]
        %v2628 = vld [vmem:[%s4] sm:$0x1]
        %v2630 = vlaneseq
        %v2631 = vshrl.u32 %v2630, 7
        %v2632 = vsub.s32 0, %v2631
        %v2633 = vrot.slane %v2628, %v2632
        %v2635 = vadd.f32 %v2612, %v2633
        %v2636 = vadd.f32 %v2613, %v2633
        %v2637 = vadd.f32 %v2614, %v2633
        %v2638 = vadd.f32 %v2615, %v2633
        %v2639 = vadd.f32 %v2616, %v2633
        %v2640 = vadd.f32 %v2617, %v2633
        %v2641 = vadd.f32 %v2618, %v2633
        %v2642 = vadd.f32 %v2619, %v2633
        %v2643 = vadd.f32 %v2620, %v2633
        %v2644 = vadd.f32 %v2621, %v2633
        %v2645 = vadd.f32 %v2622, %v2633
        %v2646 = vadd.f32 %v2623, %v2633
        %v2647 = vadd.f32 %v2624, %v2633
        %v2648 = vadd.f32 %v2625, %v2633
        %v2649 = vadd.f32 %v2626, %v2633
        %v2650 = vadd.f32 %v2627, %v2633
        %v2651 = vmax.f32 %v2635, 0.0
        %v2652 = vmax.f32 %v2636, 0.0
        %v2653 = vmax.f32 %v2637, 0.0
        %v2654 = vmax.f32 %v2638, 0.0
        %v2655 = vmax.f32 %v2639, 0.0
        %v2656 = vmax.f32 %v2640, 0.0
        %v2657 = vmax.f32 %v2641, 0.0
        %v2658 = vmax.f32 %v2642, 0.0
        %v2659 = vmax.f32 %v2643, 0.0
        %v2660 = vmax.f32 %v2644, 0.0
        %v2661 = vmax.f32 %v2645, 0.0
        %v2662 = vmax.f32 %v2646, 0.0
        %v2663 = vmax.f32 %v2647, 0.0
        %v2664 = vmax.f32 %v2648, 0.0
        %v2665 = vmax.f32 %v2649, 0.0
        %v2666 = vmax.f32 %v2650, 0.0
        %2667 = vxpose.xlu0.b32.start [1/16] %v2651, 128
        %2668 = vxpose.xlu0.b32.cont [2/16] %v2652, 128
        %2669 = vxpose.xlu0.b32.cont [3/16] %v2653, 128
        %2670 = vxpose.xlu0.b32.cont [4/16] %v2654, 128
        %2671 = vxpose.xlu0.b32.cont [5/16] %v2655, 128
        %2672 = vxpose.xlu0.b32.cont [6/16] %v2656, 128
        %2673 = vxpose.xlu0.b32.cont [7/16] %v2657, 128
        %2674 = vxpose.xlu0.b32.cont [8/16] %v2658, 128
        %2675 = vxpose.xlu0.b32.cont [9/16] %v2659, 128
        %2676 = vxpose.xlu0.b32.cont [10/16] %v2660, 128
        %2677 = vxpose.xlu0.b32.cont [11/16] %v2661, 128
        %2678 = vxpose.xlu0.b32.cont [12/16] %v2662, 128
        %2679 = vxpose.xlu0.b32.cont [13/16] %v2663, 128
        %2680 = vxpose.xlu0.b32.cont [14/16] %v2664, 128
        %2681 = vxpose.xlu0.b32.cont [15/16] %v2665, 128
        %2682 = vxpose.xlu0.b32.end [16/16] %v2666, 128
        %v2683 = vpop.trf.xlu0
        %v2684 = vpop.trf.xlu0
        %v2685 = vpop.trf.xlu0
        %v2686 = vpop.trf.xlu0
        %v2687 = vpop.trf.xlu0
        %v2688 = vpop.trf.xlu0
        %v2689 = vpop.trf.xlu0
        %v2690 = vpop.trf.xlu0
        %v2691 = vpop.trf.xlu0
        %v2692 = vpop.trf.xlu0
        %v2693 = vpop.trf.xlu0
        %v2694 = vpop.trf.xlu0
        %v2695 = vpop.trf.xlu0
        %v2696 = vpop.trf.xlu0
        %v2697 = vpop.trf.xlu0
        %v2698 = vpop.trf.xlu0
        %2699 = vst [vmem:[%s286] sm:$0xff] %v2683
        %2700 = vst [vmem:[%s286 + $0x8] sm:$0xff] %v2684
        %2701 = vst [vmem:[%s286 + $0x10] sm:$0xff] %v2685
        %2702 = vst [vmem:[%s286 + $0x18] sm:$0xff] %v2686
      $region48: #{_lambda_.1} parent=39 // pred_fallthru
        _
      %p2703 = scmp.lt.s32.totalorder %s21, 1
      %s2704 = scalar_select %p2703, %s21, 1
      %p2705 = scmp.lt.s32.totalorder %s22, 0
      %s2706 = scalar_select %p2705, %s22, 0
      %s2707 = smul.addr %s2704, 4
      %s2708 = sadd.s32 %s2706, %s2707
      %s2709 = smul.addr %s2708, 8
      %s2710 = scalar_lea.vmem %s5, %s2709
      // Predicated region
      $region49: #{_lambda_.1} parent=39 // pred_check
        %p2711 = pneg %p169
      $region50: #{_lambda_.1} parent=39 // pred_check_branch
        %2713 = sbr.rel (%p2711) target = $region52
      $region51: #{_lambda_.1} parent=39 // pred_region
        _
      $region52: #{_lambda_.1} parent=39 // pred_fallthru
        _
    $region40: #{_lambda_.1} parent=5 // pred_fallthru
      _
    %p2714 = scmp.le.s32.totalorder 2, %s11
    // Predicated region
    $region53: #{_lambda_.1} parent=5 // pred_check
      %p2715 = pneg %p2714
    $region54: #{_lambda_.1} parent=5 // pred_check_branch
      %2717 = sbr.rel (%p2715) target = $region56
    $region55: #{_lambda_.1} parent=5 // pred_region
      %s2718 = ssub.s32 %s11, 2
      // Predicated region
      $region57: #{_lambda_.1} parent=55 // pred_check
        %p2719 = pneg %p175
      $region58: #{_lambda_.1} parent=55 // pred_check_branch
        %2721 = sbr.rel (%p2719) target = $region60
      $region59: #{_lambda_.1} parent=55 // pred_region
        %p2722 = scmp.lt.s32.totalorder %s24, 1
        %s2723 = scalar_select %p2722, %s24, 1
        %p2724 = scmp.lt.s32.totalorder %s25, 0
        %s2725 = scalar_select %p2724, %s25, 0
        %s2726 = smul.addr %s2723, 4
        %s2727 = sadd.s32 %s2725, %s2726
        %s2728 = smul.addr %s2727, 8
        %s2729 = scalar_lea.vmem %s5, %s2728
      $region60: #{_lambda_.1} parent=55 // pred_fallthru
        _
    $region56: #{_lambda_.1} parent=5 // pred_fallthru
      _
  $region6: #{_lambda_.1} parent=0 // loop_footer
    %s15 = sadd.s32 1, %s11
  $region7: #{_lambda_.1} parent=0 // loop_footer_branch
    %10 = sbr.rel target = $region3
  $region8: #{_lambda_.1} parent=0 // loop_exit
    _

</llo_original>
